<compile_context>
chip_gen: v5e
topology: v5e:2x2
jax: 0.10.0
libtpu: 0.0.40
codegen_flags: <defaults>
</compile_context>

<pallas_src>
import functools
import math

import jax
import jax.numpy as jnp
from jax.experimental import pallas as pl
from jax.experimental.pallas import tpu as pltpu

LN_EPS = 1e-5          # nn.LayerNorm default
_MASK_NEG = -1e30      # stands in for PyTorch's -inf on a bool key_padding_mask


# ---------------------------------------------------------------------------
# helpers
# ---------------------------------------------------------------------------
def _round_up(x, m):
    return (x + m - 1) // m * m


def _pick_tile(total, candidates=(512, 256, 128)):
    """Largest candidate tile that divides `total` (total is a multiple of 128)."""
    for c in candidates:
        if total % c == 0:
            return c
    return total


def _vmem_limit_bytes():
    """~3/4 of physical VMEM, capped at 100 MiB (=> ~96 MiB on v5e/v6e, ~48 MiB on v7x)."""
    try:
        cap = int(pltpu.get_tpu_info().vmem_capacity_bytes)
    except Exception:
        cap = 64 * 1024 * 1024          # conservative (v7x-sized) fallback
    return int(min(cap * 3 // 4, 100 * 1024 * 1024))


def _build_attn_bias(pad_mask, pairwise_bias, B, N, N_pad):
    """Additive attention-logit bias in bf16, padded along the key axis to N_pad.

    Replicates the module + nn.MultiheadAttention semantics:
      * pairwise_bias given: it is the float attn_mask; the module casts a bool
        pad_mask to float, so padded keys get an ADDITIVE +1.0.
      * only pad_mask given: bool key_padding_mask -> -inf at padded keys
        (emulated with -1e30).
    Internal sequence padding (N -> N_pad) keys are masked with -1e30.
    Returns [B, N_pad, N_pad], [B, 1, N_pad], or None (no masking needed at all).
    """
    pad = N_pad - N
    if pairwise_bias is not None:
        bias = pairwise_bias.astype(jnp.float32)
        if pad_mask is not None:
            bias = bias + pad_mask.astype(jnp.float32)[:, None, :]
        if pad:
            bias = jnp.pad(bias, ((0, 0), (0, pad), (0, pad)),
                           constant_values=_MASK_NEG)
        return bias.astype(jnp.bfloat16)
    if pad_mask is not None:
        bias = jnp.where(pad_mask, _MASK_NEG, 0.0).astype(jnp.float32)[:, None, :]
        if pad:
            bias = jnp.pad(bias, ((0, 0), (0, 0), (0, pad)),
                           constant_values=_MASK_NEG)
        return bias.astype(jnp.bfloat16)
    if pad:
        bias = jnp.zeros((B, 1, N_pad), jnp.float32).at[:, :, N:].set(_MASK_NEG)
        return bias.astype(jnp.bfloat16)
    return None


# ---------------------------------------------------------------------------
# Stage 1: LayerNorm1 + fused Q/K/V projection.   grid = (tokens // BT,)
# ---------------------------------------------------------------------------
def _ln_qkv_kernel(x_ref, g1_ref, b1_ref, wqkv_ref, bqkv_ref,
                   q_ref, k_ref, v_ref, *, d_model):
    x = x_ref[...]                                           # [BT, D] f32
    mu = jnp.mean(x, axis=-1, keepdims=True)
    var = jnp.mean(jnp.square(x - mu), axis=-1, keepdims=True)
    z = (x - mu) * jax.lax.rsqrt(var + LN_EPS) * g1_ref[...] + b1_ref[...]
    zb = z.astype(jnp.bfloat16)                              # bf16 MXU operands, f32 acc
    qkv = jnp.dot(zb, wqkv_ref[...],
                  preferred_element_type=jnp.float32) + bqkv_ref[...]   # [BT, 3D]
    D = d_model
    q_ref[...] = qkv[:, :D].astype(q_ref.dtype)              # q columns are pre-scaled
    k_ref[...] = qkv[:, D:2 * D].astype(k_ref.dtype)
    v_ref[...] = qkv[:, 2 * D:].astype(v_ref.dtype)


# ---------------------------------------------------------------------------
# Stage 2: flash attention, all heads in one body.  grid = (B, q_blocks, kv_blocks)
# ---------------------------------------------------------------------------
def _flash_attn_kernel(*refs, n_heads, head_dim, bias_mode):
    # bias_mode: 0 = no bias, 1 = row-broadcast [1,1,BK], 2 = full [1,BQ,BK]
    if bias_mode:
        q_ref, k_ref, v_ref, bias_ref, o_ref, m_s, l_s, acc_s = refs
    else:
        q_ref, k_ref, v_ref, o_ref, m_s, l_s, acc_s = refs
        bias_ref = None
    kv = pl.program_id(2)

    @pl.when(kv == 0)
    def _():
        m_s[...] = jnp.full_like(m_s, -jnp.inf)
        l_s[...] = jnp.zeros_like(l_s)
        acc_s[...] = jnp.zeros_like(acc_s)

    q = q_ref[0]                                             # [BQ, D] bf16 (q pre-scaled)
    k = k_ref[0]                                             # [BK, D] bf16
    v = v_ref[0]                                             # [BK, D] bf16
    bias = bias_ref[0].astype(jnp.float32) if bias_mode else None   # cast once, reused by all heads

    dh = head_dim
    for h in range(n_heads):                                 # heads inside the kernel
        sl = slice(h * dh, (h + 1) * dh)
        # q_h @ k_h^T without materializing a transpose (contract last dims)
        s = jax.lax.dot_general(q[:, sl], k[:, sl], (((1,), (1,)), ((), ())),
                                preferred_element_type=jnp.float32)   # [BQ, BK]
        if bias is not None:
            s = s + bias
        m_prev = m_s[h]
        m_new = jnp.maximum(m_prev, jnp.max(s, axis=-1, keepdims=True))
        alpha = jnp.exp(m_prev - m_new)
        p = jnp.exp(s - m_new)
        l_s[h] = alpha * l_s[h] + jnp.sum(p, axis=-1, keepdims=True)
        acc_s[h] = alpha * acc_s[h] + jnp.dot(p.astype(v.dtype), v[:, sl],
                                              preferred_element_type=jnp.float32)
        m_s[h] = m_new

    @pl.when(kv == pl.num_programs(2) - 1)
    def _():
        for h in range(n_heads):
            inv = pl.reciprocal(l_s[h], approx=True)         # EUP slot, frees the VALU
            o_ref[0, :, h * dh:(h + 1) * dh] = (acc_s[h] * inv).astype(o_ref.dtype)


# ---------------------------------------------------------------------------
# Stage 3: out-proj + residual + LN2 + FFN (DFF-chunked).  grid = (tokens//BT, dff_chunks)
# ---------------------------------------------------------------------------
def _out_ffn_kernel(x_ref, attn_ref, g2_ref, b2_ref, wo_ref, bo_ref,
                    w1_ref, bf1_ref, w2_ref, bf2_ref, o_ref,
                    x1_s, z2_s, acc_s):
    f = pl.program_id(1)

    @pl.when(f == 0)
    def _():
        attn_out = jnp.dot(attn_ref[...], wo_ref[...],
                           preferred_element_type=jnp.float32) + bo_ref[...]
        x1 = x_ref[...] + attn_out                           # residual; dropout1 == identity
        x1_s[...] = x1
        mu = jnp.mean(x1, axis=-1, keepdims=True)
        var = jnp.mean(jnp.square(x1 - mu), axis=-1, keepdims=True)
        z2 = (x1 - mu) * jax.lax.rsqrt(var + LN_EPS) * g2_ref[...] + b2_ref[...]
        z2_s[...] = z2.astype(jnp.bfloat16)
        acc_s[...] = jnp.zeros_like(acc_s)

    hid = jnp.dot(z2_s[...], w1_ref[...],
                  preferred_element_type=jnp.float32) + bf1_ref[...]
    hid = jax.nn.gelu(hid, approximate=False)                # nn.GELU() default = exact erf
    acc_s[...] += jnp.dot(hid.astype(jnp.bfloat16), w2_ref[...],
                          preferred_element_type=jnp.float32)

    @pl.when(f == pl.num_programs(1) - 1)
    def _():
        # residual; dropout2 == identity (eval)
        o_ref[...] = (x1_s[...] + acc_s[...] + bf2_ref[...]).astype(o_ref.dtype)


# ---------------------------------------------------------------------------
# Wrapper
# ---------------------------------------------------------------------------
def transformer_encoder_layer(x, params, pad_mask=None, pairwise_bias=None,
                              rel_pos_bias=None):
    """Eval-mode forward of the PyTorch TransformerEncoderLayer. x: [B, N, D] f32."""
    if rel_pos_bias is not None:
        # TODO(synk): rel_pos_bias is an external nn.Module callable; evaluate it
        # outside and fold its [N, N] output into `pairwise_bias` instead.
        raise NotImplementedError("rel_pos_bias module is not translated")

    B, N, D = x.shape
    H = params["n_heads"]
    assert D % H == 0, "d_model must be divisible by n_heads"
    dh = D // H
    scale = 1.0 / math.sqrt(dh)
    f32, bf16 = jnp.float32, jnp.bfloat16
    vmem_limit = _vmem_limit_bytes()

    # ---- tiling / padding (no full-dim fallbacks: pad to tile multiples) ----
    SEQ_BLK = min(256, _round_up(N, 128))     # BQ == BK
    N_pad = _round_up(N, SEQ_BLK)
    T = B * N_pad                             # flattened (and padded) token axis
    BT = _pick_tile(T)                        # token tile for stages 1 & 3
    DFF = params["w1"].shape[0]
    DFF_pad = _round_up(DFF, 128)
    BF = _pick_tile(DFF_pad)                  # FFN hidden chunk

    # ---- host-side parameter plumbing: [K, N] layout, bf16 matmul weights ----
    w_in, b_in = params["w_in"], params["b_in"]              # [3D, D], [3D] (q;k;v rows)
    col_scale = jnp.concatenate([jnp.full((D,), scale, f32), jnp.ones((2 * D,), f32)])
    wqkv_t = (w_in.T.astype(f32) * col_scale[None, :]).astype(bf16)   # [D, 3D], q pre-scaled
    bqkv = (b_in.astype(f32) * col_scale).reshape(1, 3 * D)
    wo_t = params["wo"].T.astype(bf16)                       # [D, D]
    bo = params["bo"].reshape(1, D).astype(f32)
    w1_t = params["w1"].T.astype(bf16)                       # [D, DFF]
    bf1 = params["bf1"].reshape(1, DFF).astype(f32)
    w2_t = params["w2"].T.astype(bf16)                       # [DFF, D]
    bf2 = params["bf2"].reshape(1, D).astype(f32)
    if DFF_pad != DFF:                                       # zero-pad the hidden dim
        w1_t = jnp.pad(w1_t, ((0, 0), (0, DFF_pad - DFF)))
        bf1 = jnp.pad(bf1, ((0, 0), (0, DFF_pad - DFF)))
        w2_t = jnp.pad(w2_t, ((0, DFF_pad - DFF), (0, 0)))
    g1 = params["g1"].reshape(1, D).astype(f32)
    b1 = params["b1"].reshape(1, D).astype(f32)
    g2 = params["g2"].reshape(1, D).astype(f32)
    b2 = params["b2"].reshape(1, D).astype(f32)

    bias = _build_attn_bias(pad_mask, pairwise_bias, B, N, N_pad)     # bf16 or None

    # pad the sequence once; everything downstream stays padded until the end
    x_p = jnp.pad(x, ((0, 0), (0, N_pad - N), (0, 0))) if N_pad != N else x
    x_tok = x_p.reshape(T, D)

    # ============================ stage 1: LN1 + QKV ==========================
    tok_spec1 = pl.BlockSpec((BT, D), lambda t: (t, 0))
    row_spec1 = pl.BlockSpec((1, D), lambda t: (0, 0))
    stage1_cost = pl.CostEstimate(
        flops=2 * T * D * 3 * D,
        transcendentals=T,
        bytes_accessed=4 * T * D + 2 * D * 3 * D + 3 * 2 * T * D)
    q, k, v = pl.pallas_call(
        functools.partial(_ln_qkv_kernel, d_model=D),
        out_shape=(jax.ShapeDtypeStruct((T, D), bf16),) * 3,
        grid_spec=pltpu.PrefetchScalarGridSpec(
            num_scalar_prefetch=0,
            grid=(T // BT,),
            in_specs=[tok_spec1, row_spec1, row_spec1,
                      pl.BlockSpec((D, 3 * D), lambda t: (0, 0)),
                      pl.BlockSpec((1, 3 * D), lambda t: (0, 0))],
            out_specs=[tok_spec1, tok_spec1, tok_spec1]),
        compiler_params=pltpu.CompilerParams(
            dimension_semantics=("parallel",), vmem_limit_bytes=vmem_limit),
        cost_estimate=stage1_cost,
    )(x_tok, g1, b1, wqkv_t, bqkv)

    qh = q.reshape(B, N_pad, D)          # free, contiguous reshapes (no transposes)
    kh = k.reshape(B, N_pad, D)
    vh = v.reshape(B, N_pad, D)

    # ============================ stage 2: attention ==========================
    nblk = N_pad // SEQ_BLK
    q_spec = pl.BlockSpec((1, SEQ_BLK, D), lambda b, i, j: (b, i, 0))
    kv_spec = pl.BlockSpec((1, SEQ_BLK, D), lambda b, i, j: (b, j, 0))
    in_specs = [q_spec, kv_spec, kv_spec]
    operands = [qh, kh, vh]
    if bias is None:
        bias_mode = 0
    elif bias.shape[1] == 1:
        bias_mode = 1
        in_specs.append(pl.BlockSpec((1, 1, SEQ_BLK), lambda b, i, j: (b, 0, j)))
        operands.append(bias)
    else:
        bias_mode = 2
        in_specs.append(pl.BlockSpec((1, SEQ_BLK, SEQ_BLK), lambda b, i, j: (b, i, j)))
        operands.append(bias)

    stage2_cost = pl.CostEstimate(
        flops=4 * B * N_pad * N_pad * D,
        transcendentals=2 * B * H * N_pad * N_pad,
        bytes_accessed=(3 * 2 * B * N_pad * D + 2 * B * N_pad * D
                        + (2 * B * N_pad * N_pad if bias_mode == 2 else 2 * B * N_pad)))
    attn = pl.pallas_call(
        functools.partial(_flash_attn_kernel, n_heads=H, head_dim=dh,
                          bias_mode=bias_mode),
        out_shape=jax.ShapeDtypeStruct((B, N_pad, D), bf16),
        grid_spec=pltpu.PrefetchScalarGridSpec(
            num_scalar_prefetch=0,
            grid=(B, nblk, nblk),
            in_specs=in_specs,
            out_specs=pl.BlockSpec((1, SEQ_BLK, D), lambda b, i, j: (b, i, 0)),
            scratch_shapes=[pltpu.VMEM((H, SEQ_BLK, 1), f32),
                            pltpu.VMEM((H, SEQ_BLK, 1), f32),
                            pltpu.VMEM((H, SEQ_BLK, dh), f32)]),
        compiler_params=pltpu.CompilerParams(
            dimension_semantics=("parallel", "parallel", "arbitrary"),
            vmem_limit_bytes=vmem_limit),
        cost_estimate=stage2_cost,
    )(*operands)

    attn_tok = attn.reshape(T, D)        # free reshape, no head transpose

    # ================== stage 3: Wo + residual + LN2 + FFN ====================
    nf = DFF_pad // BF
    tok_spec3 = pl.BlockSpec((BT, D), lambda t, f: (t, 0))
    row_spec3 = pl.BlockSpec((1, D), lambda t, f: (0, 0))
    stage3_cost = pl.CostEstimate(
        flops=2 * T * (D * D + 2 * D * DFF_pad),
        transcendentals=T * DFF_pad + T,
        bytes_accessed=(4 * T * D + 2 * T * D + 4 * T * D
                        + 2 * (D * D + 2 * D * DFF_pad)))
    out = pl.pallas_call(
        _out_ffn_kernel,
        out_shape=jax.ShapeDtypeStruct((T, D), x.dtype),
        grid_spec=pltpu.PrefetchScalarGridSpec(
            num_scalar_prefetch=0,
            grid=(T // BT, nf),
            in_specs=[tok_spec3, tok_spec3, row_spec3, row_spec3,
                      pl.BlockSpec((D, D), lambda t, f: (0, 0)), row_spec3,
                      pl.BlockSpec((D, BF), lambda t, f: (0, f)),
                      pl.BlockSpec((1, BF), lambda t, f: (0, f)),
                      pl.BlockSpec((BF, D), lambda t, f: (f, 0)),
                      row_spec3],
            out_specs=tok_spec3,
            scratch_shapes=[pltpu.VMEM((BT, D), f32),
                            pltpu.VMEM((BT, D), bf16),
                            pltpu.VMEM((BT, D), f32)]),
        compiler_params=pltpu.CompilerParams(
            dimension_semantics=("parallel", "arbitrary"),
            vmem_limit_bytes=vmem_limit),
        cost_estimate=stage3_cost,
    )(x_tok, attn_tok, g2, b2, wo_t, bo, w1_t, bf1, w2_t, bf2)

    out = out.reshape(B, N_pad, D)
    return out[:, :N] if N_pad != N else out


# ---------------------------------------------------------------------------
# Pure-JAX f32 reference of the same eval-mode forward pass (for self-check)
# ---------------------------------------------------------------------------
def _reference_bias(pad_mask, pairwise_bias, B, N):
    if pairwise_bias is not None:
        bias = pairwise_bias.astype(jnp.float32)
        if pad_mask is not None:
            bias = bias + pad_mask.astype(jnp.float32)[:, None, :]
        return bias
    if pad_mask is not None:
        return jnp.where(pad_mask, _MASK_NEG, 0.0).astype(jnp.float32)[:, None, :]
    return jnp.zeros((B, 1, N), jnp.float32)


def _reference(x, params, pad_mask=None, pairwise_bias=None):
    B, N, D = x.shape
    H = params["n_heads"]
    dh = D // H

    def ln(v, g, b):
        mu = v.mean(-1, keepdims=True)
        var = ((v - mu) ** 2).mean(-1, keepdims=True)
        return (v - mu) / jnp.sqrt(var + LN_EPS) * g + b

    bias = _reference_bias(pad_mask, pairwise_bias, B, N)        # [B, Nb, N]
    z = ln(x, params["g1"], params["b1"])
    qkv = z @ params["w_in"].T + params["b_in"]
    q, k, v = jnp.split(qkv, 3, axis=-1)
    q = q.reshape(B, N, H, dh).transpose(0, 2, 1, 3) / jnp.sqrt(dh)
    k = k.reshape(B, N, H, dh).transpose(0, 2, 1, 3)
    v = v.reshape(B, N, H, dh).transpose(0, 2, 1, 3)
    s = q @ k.transpose(0, 1, 3, 2) + bias[:, None]
    p = jax.nn.softmax(s, axis=-1)
    a = (p @ v).transpose(0, 2, 1, 3).reshape(B, N, D)
    attn_out = a @ params["wo"].T + params["bo"]
    x1 = x + attn_out
    z2 = ln(x1, params["g2"], params["b2"])
    h = jax.nn.gelu(z2 @ params["w1"].T + params["bf1"], approximate=False)
    return x1 + h @ params["w2"].T + params["bf2"]


if __name__ == "__main__":
    B, D, H, DFF = 2, 32, 4, 64
    key = jax.random.PRNGKey(0)
    ks = jax.random.split(key, 16)

    def rnd(k, shape, s=0.05):
        return jax.random.normal(k, shape, jnp.float32) * s

    params = {
        "n_heads": H,
        "g1": 1.0 + rnd(ks[0], (D,)),   "b1": rnd(ks[1], (D,)),
        "g2": 1.0 + rnd(ks[2], (D,)),   "b2": rnd(ks[3], (D,)),
        "w_in": rnd(ks[4], (3 * D, D)), "b_in": rnd(ks[5], (3 * D,)),
        "wo": rnd(ks[6], (D, D)),       "bo": rnd(ks[7], (D,)),
        "w1": rnd(ks[8], (DFF, D)),     "bf1": rnd(ks[9], (DFF,)),
        "w2": rnd(ks[10], (D, DFF)),    "bf2": rnd(ks[11], (D,)),
    }

    # (N, use_pad_mask, use_pairwise_bias)
    cases = [
        (8, True, True),      # float-add pad semantics (module casts bool mask to float)
        (8, True, False),     # bool key_padding_mask -> -inf
        (8, False, False),    # no user mask; internal N->128 padding exercises the key-pad bias
        (128, False, False),  # no mask, aligned N -> bias-free attention kernel variant
    ]
    for ci, (N, use_pad, use_pw) in enumerate(cases):
        kc = jax.random.fold_in(key, ci)
        kx, kb = jax.random.split(kc)
        x = jax.random.normal(kx, (B, N, D), jnp.float32)
        pw = rnd(kb, (B, N, N), 0.1) if use_pw else None
        pm = None
        if use_pad:
            pm = jnp.zeros((B, N), bool).at[0, -1].set(True).at[1, -2].set(True)
        out = jax.block_until_ready(
            transformer_encoder_layer(x, params, pad_mask=pm, pairwise_bias=pw))
        ref = _reference(x, params, pad_mask=pm, pairwise_bias=pw)
        assert out.shape == (B, N, D)
        err = float(jnp.max(jnp.abs(out - ref)))
        assert jnp.allclose(out, ref, atol=2e-2, rtol=2e-2), \
            f"case {ci}: max abs err {err}"

    print("KERNEL_OK")
</pallas_src>

<mosaic_0001>
module attributes {stable_mosaic.version = 11 : i64} {
  func.func @_ln_qkv_kernel(%arg0: i32, %arg1: memref<256x32xf32, #tpu.memory_space<vmem>>, %arg2: memref<1x32xf32, #tpu.memory_space<vmem>>, %arg3: memref<1x32xf32, #tpu.memory_space<vmem>>, %arg4: memref<32x96xbf16, #tpu.memory_space<vmem>>, %arg5: memref<1x96xf32, #tpu.memory_space<vmem>>, %arg6: memref<256x32xbf16, #tpu.memory_space<vmem>>, %arg7: memref<256x32xbf16, #tpu.memory_space<vmem>>, %arg8: memref<256x32xbf16, #tpu.memory_space<vmem>>) attributes {dimension_semantics = [#tpu.dimension_semantics<parallel>], iteration_bounds = array<i64: 1>, scalar_prefetch = 0 : i64, scratch_operands = 0 : i64, tpu.core_type = #tpu.core_type<tc>, window_params = [{transform_indices = @transform_0, window_bounds = array<i64: 256, 32>}, {pipeline_mode = #tpu.pipeline_mode<synchronous>, transform_indices = @transform_1, window_bounds = array<i64: 1, 32>}, {pipeline_mode = #tpu.pipeline_mode<synchronous>, transform_indices = @transform_2, window_bounds = array<i64: 1, 32>}, {pipeline_mode = #tpu.pipeline_mode<synchronous>, transform_indices = @transform_3, window_bounds = array<i64: 32, 96>}, {pipeline_mode = #tpu.pipeline_mode<synchronous>, transform_indices = @transform_4, window_bounds = array<i64: 1, 96>}, {transform_indices = @transform_5, window_bounds = array<i64: 256, 32>}, {transform_indices = @transform_6, window_bounds = array<i64: 256, 32>}, {transform_indices = @transform_7, window_bounds = array<i64: 256, 32>}]} {
    %c0 = arith.constant 0 : index
    %c0_0 = arith.constant 0 : index
    %0 = vector.load %arg1[%c0, %c0_0] : memref<256x32xf32, #tpu.memory_space<vmem>>, vector<256x32xf32>
    %cst = arith.constant dense<0.000000e+00> : vector<256xf32>
    %1 = vector.multi_reduction <add>, %0, %cst [1] : vector<256x32xf32> to vector<256xf32>
    %2 = vector.shape_cast %1 : vector<256xf32> to vector<256x1xf32>
    %cst_1 = arith.constant 3.200000e+01 : f32
    %3 = vector.broadcast %cst_1 : f32 to vector<256x1xf32>
    %4 = arith.divf %2, %3 : vector<256x1xf32>
    %5 = vector.broadcast %4 : vector<256x1xf32> to vector<256x32xf32>
    %6 = arith.subf %0, %5 : vector<256x32xf32>
    %7 = arith.mulf %6, %6 : vector<256x32xf32>
    %cst_2 = arith.constant dense<0.000000e+00> : vector<256xf32>
    %8 = vector.multi_reduction <add>, %7, %cst_2 [1] : vector<256x32xf32> to vector<256xf32>
    %9 = vector.shape_cast %8 : vector<256xf32> to vector<256x1xf32>
    %cst_3 = arith.constant 3.200000e+01 : f32
    %10 = vector.broadcast %cst_3 : f32 to vector<256x1xf32>
    %11 = arith.divf %9, %10 : vector<256x1xf32>
    %12 = vector.broadcast %4 : vector<256x1xf32> to vector<256x32xf32>
    %13 = arith.subf %0, %12 : vector<256x32xf32>
    %cst_4 = arith.constant 9.99999974E-6 : f32
    %14 = vector.broadcast %cst_4 : f32 to vector<256x1xf32>
    %15 = arith.addf %11, %14 : vector<256x1xf32>
    %16 = math.rsqrt %15 : vector<256x1xf32>
    %17 = vector.broadcast %16 : vector<256x1xf32> to vector<256x32xf32>
    %18 = arith.mulf %13, %17 : vector<256x32xf32>
    %c0_5 = arith.constant 0 : index
    %c0_6 = arith.constant 0 : index
    %19 = vector.load %arg2[%c0_5, %c0_6] : memref<1x32xf32, #tpu.memory_space<vmem>>, vector<1x32xf32>
    %20 = vector.broadcast %19 : vector<1x32xf32> to vector<256x32xf32>
    %21 = arith.mulf %18, %20 : vector<256x32xf32>
    %c0_7 = arith.constant 0 : index
    %c0_8 = arith.constant 0 : index
    %22 = vector.load %arg3[%c0_7, %c0_8] : memref<1x32xf32, #tpu.memory_space<vmem>>, vector<1x32xf32>
    %23 = vector.broadcast %22 : vector<1x32xf32> to vector<256x32xf32>
    %24 = arith.addf %21, %23 : vector<256x32xf32>
    %25 = arith.truncf %24 : vector<256x32xf32> to vector<256x32xbf16>
    %c0_9 = arith.constant 0 : index
    %c0_10 = arith.constant 0 : index
    %26 = vector.load %arg4[%c0_9, %c0_10] : memref<32x96xbf16, #tpu.memory_space<vmem>>, vector<32x96xbf16>
    %cst_11 = arith.constant dense<0.000000e+00> : vector<256x96xf32>
    %27 = tpu.matmul %25, %26, %cst_11 {dimension_numbers = #tpu.dot_dimension_numbers<[1], [0], [0], [1], [0, 0, 1, 1], [], []>} : vector<256x32xbf16>, vector<32x96xbf16>, vector<256x96xf32> -> vector<256x96xf32>
    %c0_12 = arith.constant 0 : index
    %c0_13 = arith.constant 0 : index
    %28 = vector.load %arg5[%c0_12, %c0_13] : memref<1x96xf32, #tpu.memory_space<vmem>>, vector<1x96xf32>
    %29 = vector.broadcast %28 : vector<1x96xf32> to vector<256x96xf32>
    %30 = arith.addf %27, %29 : vector<256x96xf32>
    %31 = vector.extract_strided_slice %30 {offsets = [0, 0], sizes = [256, 32], strides = [1, 1]} : vector<256x96xf32> to vector<256x32xf32>
    %32 = arith.truncf %31 : vector<256x32xf32> to vector<256x32xbf16>
    %c0_14 = arith.constant 0 : index
    %c0_15 = arith.constant 0 : index
    %33 = vector.load %arg6[%c0_14, %c0_15] : memref<256x32xbf16, #tpu.memory_space<vmem>>, vector<256x32xbf16>
    tpu.vector_store %arg6[%c0_14, %c0_15], %32 {strides = array<i32>} : memref<256x32xbf16, #tpu.memory_space<vmem>>, vector<256x32xbf16>,
    %34 = vector.extract_strided_slice %30 {offsets = [0, 32], sizes = [256, 32], strides = [1, 1]} : vector<256x96xf32> to vector<256x32xf32>
    %35 = arith.truncf %34 : vector<256x32xf32> to vector<256x32xbf16>
    %c0_16 = arith.constant 0 : index
    %c0_17 = arith.constant 0 : index
    %36 = vector.load %arg7[%c0_16, %c0_17] : memref<256x32xbf16, #tpu.memory_space<vmem>>, vector<256x32xbf16>
    tpu.vector_store %arg7[%c0_16, %c0_17], %35 {strides = array<i32>} : memref<256x32xbf16, #tpu.memory_space<vmem>>, vector<256x32xbf16>,
    %37 = vector.extract_strided_slice %30 {offsets = [0, 64], sizes = [256, 32], strides = [1, 1]} : vector<256x96xf32> to vector<256x32xf32>
    %38 = arith.truncf %37 : vector<256x32xf32> to vector<256x32xbf16>
    %c0_18 = arith.constant 0 : index
    %c0_19 = arith.constant 0 : index
    %39 = vector.load %arg8[%c0_18, %c0_19] : memref<256x32xbf16, #tpu.memory_space<vmem>>, vector<256x32xbf16>
    tpu.vector_store %arg8[%c0_18, %c0_19], %38 {strides = array<i32>} : memref<256x32xbf16, #tpu.memory_space<vmem>>, vector<256x32xbf16>,
    return
  }
  func.func @transform_0(%arg0: i32) -> (i32, i32) {
    %c0_i32 = arith.constant 0 : i32
    %c0_i32_0 = arith.constant 0 : i32
    return %arg0, %c0_i32 : i32, i32
  }
  func.func @transform_1(%arg0: i32) -> (i32, i32) {
    %c0_i32 = arith.constant 0 : i32
    %c0_i32_0 = arith.constant 0 : i32
    %c0_i32_1 = arith.constant 0 : i32
    return %c0_i32, %c0_i32_0 : i32, i32
  }
  func.func @transform_2(%arg0: i32) -> (i32, i32) {
    %c0_i32 = arith.constant 0 : i32
    %c0_i32_0 = arith.constant 0 : i32
    %c0_i32_1 = arith.constant 0 : i32
    return %c0_i32, %c0_i32_0 : i32, i32
  }
  func.func @transform_3(%arg0: i32) -> (i32, i32) {
    %c0_i32 = arith.constant 0 : i32
    %c0_i32_0 = arith.constant 0 : i32
    %c0_i32_1 = arith.constant 0 : i32
    return %c0_i32, %c0_i32_0 : i32, i32
  }
  func.func @transform_4(%arg0: i32) -> (i32, i32) {
    %c0_i32 = arith.constant 0 : i32
    %c0_i32_0 = arith.constant 0 : i32
    %c0_i32_1 = arith.constant 0 : i32
    return %c0_i32, %c0_i32_0 : i32, i32
  }
  func.func @transform_5(%arg0: i32) -> (i32, i32) {
    %c0_i32 = arith.constant 0 : i32
    %c0_i32_0 = arith.constant 0 : i32
    return %arg0, %c0_i32 : i32, i32
  }
  func.func @transform_6(%arg0: i32) -> (i32, i32) {
    %c0_i32 = arith.constant 0 : i32
    %c0_i32_0 = arith.constant 0 : i32
    return %arg0, %c0_i32 : i32, i32
  }
  func.func @transform_7(%arg0: i32) -> (i32, i32) {
    %c0_i32 = arith.constant 0 : i32
    %c0_i32_0 = arith.constant 0 : i32
    return %arg0, %c0_i32 : i32, i32
  }
}

</mosaic_0001>

<llo_original>
// kernel: tpu_custom_call.1
$region0: #{tpu_custom_call.1}
  #allocation0 [shape = 'u32[]', space=smem, size = 0x4, offset = 0x4, fixed_abs, tag = 'smem constant byte address 0x4 - core index']
  #allocation1 [shape = 'u32[72,128]{1,0:T(1,128)}', space=vmem, size = 0x9000, scoped, tag = 'internal scratch']
  %s0 = inlined_call_operand.vmem [shape: f32[256,32], index: 0, kind: input, shape index: {}]
  %s1 = inlined_call_operand.vmem [shape: f32[1,32], index: 1, kind: input, shape index: {}]
  %s2 = inlined_call_operand.vmem [shape: f32[1,32], index: 2, kind: input, shape index: {}]
  %s3 = inlined_call_operand.vmem [shape: bf16[32,96], index: 3, kind: input, shape index: {}]
  %s4 = inlined_call_operand.vmem [shape: f32[1,96], index: 4, kind: input, shape index: {}]
  %s5 = inlined_call_operand.vmem [shape: bf16[256,32], index: 5, kind: output, shape index: {0}]
  %s6 = inlined_call_operand.vmem [shape: bf16[256,32], index: 6, kind: output, shape index: {1}]
  %s7 = inlined_call_operand.vmem [shape: bf16[256,32], index: 7, kind: output, shape index: {2}]
  %8 = xla_tuple %s5, %s6, %s7
  %s9 = sld [smem:[#allocation0]]
  $region46: #{tpu_custom_call.1} parent=0
    _
  %s11 = ssub.s32 1, %s9
  %s12 = scalar_select 0, %s11, %s9
  // Predicated region
  $region2: #{tpu_custom_call.1} parent=0 // pred_check
    _
  $region3: #{tpu_custom_call.1} parent=0 // pred_check_branch
    %14 = sbr.rel (0) target = $region5
  $region4: #{tpu_custom_call.1} parent=0 // pred_region
    _
  $region5: #{tpu_custom_call.1} parent=0 // pred_fallthru
    _
  // Predicated region
  $region6: #{tpu_custom_call.1} parent=0 // pred_check
    _
  $region7: #{tpu_custom_call.1} parent=0 // pred_check_branch
    %16 = sbr.rel (0) target = $region9
  $region8: #{tpu_custom_call.1} parent=0 // pred_region
    _
  $region9: #{tpu_custom_call.1} parent=0 // pred_fallthru
    _
  // Predicated region
  $region10: #{tpu_custom_call.1} parent=0 // pred_check
    _
  $region11: #{tpu_custom_call.1} parent=0 // pred_check_branch
    %18 = sbr.rel (0) target = $region13
  $region12: #{tpu_custom_call.1} parent=0 // pred_region
    _
  $region13: #{tpu_custom_call.1} parent=0 // pred_fallthru
    _
  // Predicated region
  $region14: #{tpu_custom_call.1} parent=0 // pred_check
    _
  $region15: #{tpu_custom_call.1} parent=0 // pred_check_branch
    %20 = sbr.rel (0) target = $region17
  $region16: #{tpu_custom_call.1} parent=0 // pred_region
    _
  $region17: #{tpu_custom_call.1} parent=0 // pred_fallthru
    _
  // Predicated region
  $region18: #{tpu_custom_call.1} parent=0 // pred_check
    _
  $region19: #{tpu_custom_call.1} parent=0 // pred_check_branch
    %22 = sbr.rel (0) target = $region21
  $region20: #{tpu_custom_call.1} parent=0 // pred_region
    _
  $region21: #{tpu_custom_call.1} parent=0 // pred_fallthru
    _
  %v24 = vld [vmem:[%s0] sm:$0xff]
  %v25 = vld [vmem:[%s0 + $0x8] sm:$0xff]
  %v26 = vld [vmem:[%s0 + $0x10] sm:$0xff]
  %v27 = vld [vmem:[%s0 + $0x18] sm:$0xff]
  %v28 = vld [vmem:[%s0 + $0x20] sm:$0xff]
  %v29 = vld [vmem:[%s0 + $0x28] sm:$0xff]
  %v30 = vld [vmem:[%s0 + $0x30] sm:$0xff]
  %v31 = vld [vmem:[%s0 + $0x38] sm:$0xff]
  %v32 = vld [vmem:[%s0 + $0x40] sm:$0xff]
  %v33 = vld [vmem:[%s0 + $0x48] sm:$0xff]
  %v34 = vld [vmem:[%s0 + $0x50] sm:$0xff]
  %v35 = vld [vmem:[%s0 + $0x58] sm:$0xff]
  %v36 = vld [vmem:[%s0 + $0x60] sm:$0xff]
  %v37 = vld [vmem:[%s0 + $0x68] sm:$0xff]
  %v38 = vld [vmem:[%s0 + $0x70] sm:$0xff]
  %v39 = vld [vmem:[%s0 + $0x78] sm:$0xff]
  %v40 = vld [vmem:[%s0 + $0x80] sm:$0xff]
  %v41 = vld [vmem:[%s0 + $0x88] sm:$0xff]
  %v42 = vld [vmem:[%s0 + $0x90] sm:$0xff]
  %v43 = vld [vmem:[%s0 + $0x98] sm:$0xff]
  %v44 = vld [vmem:[%s0 + $0xa0] sm:$0xff]
  %v45 = vld [vmem:[%s0 + $0xa8] sm:$0xff]
  %v46 = vld [vmem:[%s0 + $0xb0] sm:$0xff]
  %v47 = vld [vmem:[%s0 + $0xb8] sm:$0xff]
  %v48 = vld [vmem:[%s0 + $0xc0] sm:$0xff]
  %v49 = vld [vmem:[%s0 + $0xc8] sm:$0xff]
  %v50 = vld [vmem:[%s0 + $0xd0] sm:$0xff]
  %v51 = vld [vmem:[%s0 + $0xd8] sm:$0xff]
  %v52 = vld [vmem:[%s0 + $0xe0] sm:$0xff]
  %v53 = vld [vmem:[%s0 + $0xe8] sm:$0xff]
  %v54 = vld [vmem:[%s0 + $0xf0] sm:$0xff]
  %v55 = vld [vmem:[%s0 + $0xf8] sm:$0xff]
  %vm56 = vcmask 261120
  %v57 = vsel %vm56, %v24, 0.0
  %58 = vadd.xlane.f32.xlu0 %v57
  %v59 = vpop.xlane.xlu0 %58
  %v60 = vsel %vm56, %v25, 0.0
  %61 = vadd.xlane.f32.xlu0 %v60
  %v62 = vpop.xlane.xlu0 %61
  %v63 = vsel %vm56, %v26, 0.0
  %64 = vadd.xlane.f32.xlu0 %v63
  %v65 = vpop.xlane.xlu0 %64
  %v66 = vsel %vm56, %v27, 0.0
  %67 = vadd.xlane.f32.xlu0 %v66
  %v68 = vpop.xlane.xlu0 %67
  %v69 = vsel %vm56, %v28, 0.0
  %70 = vadd.xlane.f32.xlu0 %v69
  %v71 = vpop.xlane.xlu0 %70
  %v72 = vsel %vm56, %v29, 0.0
  %73 = vadd.xlane.f32.xlu0 %v72
  %v74 = vpop.xlane.xlu0 %73
  %v75 = vsel %vm56, %v30, 0.0
  %76 = vadd.xlane.f32.xlu0 %v75
  %v77 = vpop.xlane.xlu0 %76
  %v78 = vsel %vm56, %v31, 0.0
  %79 = vadd.xlane.f32.xlu0 %v78
  %v80 = vpop.xlane.xlu0 %79
  %v81 = vsel %vm56, %v32, 0.0
  %82 = vadd.xlane.f32.xlu0 %v81
  %v83 = vpop.xlane.xlu0 %82
  %v84 = vsel %vm56, %v33, 0.0
  %85 = vadd.xlane.f32.xlu0 %v84
  %v86 = vpop.xlane.xlu0 %85
  %v87 = vsel %vm56, %v34, 0.0
  %88 = vadd.xlane.f32.xlu0 %v87
  %v89 = vpop.xlane.xlu0 %88
  %v90 = vsel %vm56, %v35, 0.0
  %91 = vadd.xlane.f32.xlu0 %v90
  %v92 = vpop.xlane.xlu0 %91
  %v93 = vsel %vm56, %v36, 0.0
  %94 = vadd.xlane.f32.xlu0 %v93
  %v95 = vpop.xlane.xlu0 %94
  %v96 = vsel %vm56, %v37, 0.0
  %97 = vadd.xlane.f32.xlu0 %v96
  %v98 = vpop.xlane.xlu0 %97
  %v99 = vsel %vm56, %v38, 0.0
  %100 = vadd.xlane.f32.xlu0 %v99
  %v101 = vpop.xlane.xlu0 %100
  %v102 = vsel %vm56, %v39, 0.0
  %103 = vadd.xlane.f32.xlu0 %v102
  %v104 = vpop.xlane.xlu0 %103
  %v105 = vsel %vm56, %v40, 0.0
  %106 = vadd.xlane.f32.xlu0 %v105
  %v107 = vpop.xlane.xlu0 %106
  %v108 = vsel %vm56, %v41, 0.0
  %109 = vadd.xlane.f32.xlu0 %v108
  %v110 = vpop.xlane.xlu0 %109
  %v111 = vsel %vm56, %v42, 0.0
  %112 = vadd.xlane.f32.xlu0 %v111
  %v113 = vpop.xlane.xlu0 %112
  %v114 = vsel %vm56, %v43, 0.0
  %115 = vadd.xlane.f32.xlu0 %v114
  %v116 = vpop.xlane.xlu0 %115
  %v117 = vsel %vm56, %v44, 0.0
  %118 = vadd.xlane.f32.xlu0 %v117
  %v119 = vpop.xlane.xlu0 %118
  %v120 = vsel %vm56, %v45, 0.0
  %121 = vadd.xlane.f32.xlu0 %v120
  %v122 = vpop.xlane.xlu0 %121
  %v123 = vsel %vm56, %v46, 0.0
  %124 = vadd.xlane.f32.xlu0 %v123
  %v125 = vpop.xlane.xlu0 %124
  %v126 = vsel %vm56, %v47, 0.0
  %127 = vadd.xlane.f32.xlu0 %v126
  %v128 = vpop.xlane.xlu0 %127
  %v129 = vsel %vm56, %v48, 0.0
  %130 = vadd.xlane.f32.xlu0 %v129
  %v131 = vpop.xlane.xlu0 %130
  %v132 = vsel %vm56, %v49, 0.0
  %133 = vadd.xlane.f32.xlu0 %v132
  %v134 = vpop.xlane.xlu0 %133
  %v135 = vsel %vm56, %v50, 0.0
  %136 = vadd.xlane.f32.xlu0 %v135
  %v137 = vpop.xlane.xlu0 %136
  %v138 = vsel %vm56, %v51, 0.0
  %139 = vadd.xlane.f32.xlu0 %v138
  %v140 = vpop.xlane.xlu0 %139
  %v141 = vsel %vm56, %v52, 0.0
  %142 = vadd.xlane.f32.xlu0 %v141
  %v143 = vpop.xlane.xlu0 %142
  %v144 = vsel %vm56, %v53, 0.0
  %145 = vadd.xlane.f32.xlu0 %v144
  %v146 = vpop.xlane.xlu0 %145
  %v147 = vsel %vm56, %v54, 0.0
  %148 = vadd.xlane.f32.xlu0 %v147
  %v149 = vpop.xlane.xlu0 %148
  %v150 = vsel %vm56, %v55, 0.0
  %151 = vadd.xlane.f32.xlu0 %v150
  %v152 = vpop.xlane.xlu0 %151
  %v153 = vrcp.pop 32.0
  %v154 = vmul.f32 32.0, %v153
  %v155 = vsub.f32 1.0, %v154
  %v156 = vmul.f32 %v153, %v155
  %v157 = vadd.f32 %v153, %v156
  %vm158 = vweird.f32 %v153
  %v159 = vsel %vm158, %v153, %v157
  %v160 = vmul.f32 %v59, %v159
  %v161 = vmul.f32 %v62, %v159
  %v162 = vmul.f32 %v65, %v159
  %v163 = vmul.f32 %v68, %v159
  %v164 = vmul.f32 %v71, %v159
  %v165 = vmul.f32 %v74, %v159
  %v166 = vmul.f32 %v77, %v159
  %v167 = vmul.f32 %v80, %v159
  %v168 = vmul.f32 %v83, %v159
  %v169 = vmul.f32 %v86, %v159
  %v170 = vmul.f32 %v89, %v159
  %v171 = vmul.f32 %v92, %v159
  %v172 = vmul.f32 %v95, %v159
  %v173 = vmul.f32 %v98, %v159
  %v174 = vmul.f32 %v101, %v159
  %v175 = vmul.f32 %v104, %v159
  %v176 = vmul.f32 %v107, %v159
  %v177 = vmul.f32 %v110, %v159
  %v178 = vmul.f32 %v113, %v159
  %v179 = vmul.f32 %v116, %v159
  %v180 = vmul.f32 %v119, %v159
  %v181 = vmul.f32 %v122, %v159
  %v182 = vmul.f32 %v125, %v159
  %v183 = vmul.f32 %v128, %v159
  %v184 = vmul.f32 %v131, %v159
  %v185 = vmul.f32 %v134, %v159
  %v186 = vmul.f32 %v137, %v159
  %v187 = vmul.f32 %v140, %v159
  %v188 = vmul.f32 %v143, %v159
  %v189 = vmul.f32 %v146, %v159
  %v190 = vmul.f32 %v149, %v159
  %v191 = vmul.f32 %v152, %v159
  %v192 = vsub.f32 %v24, %v160
  %v193 = vsub.f32 %v25, %v161
  %v194 = vsub.f32 %v26, %v162
  %v195 = vsub.f32 %v27, %v163
  %v196 = vsub.f32 %v28, %v164
  %v197 = vsub.f32 %v29, %v165
  %v198 = vsub.f32 %v30, %v166
  %v199 = vsub.f32 %v31, %v167
  %v200 = vsub.f32 %v32, %v168
  %v201 = vsub.f32 %v33, %v169
  %v202 = vsub.f32 %v34, %v170
  %v203 = vsub.f32 %v35, %v171
  %v204 = vsub.f32 %v36, %v172
  %v205 = vsub.f32 %v37, %v173
  %v206 = vsub.f32 %v38, %v174
  %v207 = vsub.f32 %v39, %v175
  %v208 = vsub.f32 %v40, %v176
  %v209 = vsub.f32 %v41, %v177
  %v210 = vsub.f32 %v42, %v178
  %v211 = vsub.f32 %v43, %v179
  %v212 = vsub.f32 %v44, %v180
  %v213 = vsub.f32 %v45, %v181
  %v214 = vsub.f32 %v46, %v182
  %v215 = vsub.f32 %v47, %v183
  %v216 = vsub.f32 %v48, %v184
  %v217 = vsub.f32 %v49, %v185
  %v218 = vsub.f32 %v50, %v186
  %v219 = vsub.f32 %v51, %v187
  %v220 = vsub.f32 %v52, %v188
  %v221 = vsub.f32 %v53, %v189
  %v222 = vsub.f32 %v54, %v190
  %v223 = vsub.f32 %v55, %v191
  %v224 = vmul.f32 %v192, %v192
  %v225 = vmul.f32 %v193, %v193
  %v226 = vmul.f32 %v194, %v194
  %v227 = vmul.f32 %v195, %v195
  %v228 = vmul.f32 %v196, %v196
  %v229 = vmul.f32 %v197, %v197
  %v230 = vmul.f32 %v198, %v198
  %v231 = vmul.f32 %v199, %v199
  %v232 = vmul.f32 %v200, %v200
  %v233 = vmul.f32 %v201, %v201
  %v234 = vmul.f32 %v202, %v202
  %v235 = vmul.f32 %v203, %v203
  %v236 = vmul.f32 %v204, %v204
  %v237 = vmul.f32 %v205, %v205
  %v238 = vmul.f32 %v206, %v206
  %v239 = vmul.f32 %v207, %v207
  %v240 = vmul.f32 %v208, %v208
  %v241 = vmul.f32 %v209, %v209
  %v242 = vmul.f32 %v210, %v210
  %v243 = vmul.f32 %v211, %v211
  %v244 = vmul.f32 %v212, %v212
  %v245 = vmul.f32 %v213, %v213
  %v246 = vmul.f32 %v214, %v214
  %v247 = vmul.f32 %v215, %v215
  %v248 = vmul.f32 %v216, %v216
  %v249 = vmul.f32 %v217, %v217
  %v250 = vmul.f32 %v218, %v218
  %v251 = vmul.f32 %v219, %v219
  %v252 = vmul.f32 %v220, %v220
  %v253 = vmul.f32 %v221, %v221
  %v254 = vmul.f32 %v222, %v222
  %v255 = vmul.f32 %v223, %v223
  %v256 = vsel %vm56, %v224, 0.0
  %257 = vadd.xlane.f32.xlu0 %v256
  %v258 = vpop.xlane.xlu0 %257
  %v259 = vsel %vm56, %v225, 0.0
  %260 = vadd.xlane.f32.xlu0 %v259
  %v261 = vpop.xlane.xlu0 %260
  %v262 = vsel %vm56, %v226, 0.0
  %263 = vadd.xlane.f32.xlu0 %v262
  %v264 = vpop.xlane.xlu0 %263
  %v265 = vsel %vm56, %v227, 0.0
  %266 = vadd.xlane.f32.xlu0 %v265
  %v267 = vpop.xlane.xlu0 %266
  %v268 = vsel %vm56, %v228, 0.0
  %269 = vadd.xlane.f32.xlu0 %v268
  %v270 = vpop.xlane.xlu0 %269
  %v271 = vsel %vm56, %v229, 0.0
  %272 = vadd.xlane.f32.xlu0 %v271
  %v273 = vpop.xlane.xlu0 %272
  %v274 = vsel %vm56, %v230, 0.0
  %275 = vadd.xlane.f32.xlu0 %v274
  %v276 = vpop.xlane.xlu0 %275
  %v277 = vsel %vm56, %v231, 0.0
  %278 = vadd.xlane.f32.xlu0 %v277
  %v279 = vpop.xlane.xlu0 %278
  %v280 = vsel %vm56, %v232, 0.0
  %281 = vadd.xlane.f32.xlu0 %v280
  %v282 = vpop.xlane.xlu0 %281
  %v283 = vsel %vm56, %v233, 0.0
  %284 = vadd.xlane.f32.xlu0 %v283
  %v285 = vpop.xlane.xlu0 %284
  %v286 = vsel %vm56, %v234, 0.0
  %287 = vadd.xlane.f32.xlu0 %v286
  %v288 = vpop.xlane.xlu0 %287
  %v289 = vsel %vm56, %v235, 0.0
  %290 = vadd.xlane.f32.xlu0 %v289
  %v291 = vpop.xlane.xlu0 %290
  %v292 = vsel %vm56, %v236, 0.0
  %293 = vadd.xlane.f32.xlu0 %v292
  %v294 = vpop.xlane.xlu0 %293
  %v295 = vsel %vm56, %v237, 0.0
  %296 = vadd.xlane.f32.xlu0 %v295
  %v297 = vpop.xlane.xlu0 %296
  %v298 = vsel %vm56, %v238, 0.0
  %299 = vadd.xlane.f32.xlu0 %v298
  %v300 = vpop.xlane.xlu0 %299
  %v301 = vsel %vm56, %v239, 0.0
  %302 = vadd.xlane.f32.xlu0 %v301
  %v303 = vpop.xlane.xlu0 %302
  %v304 = vsel %vm56, %v240, 0.0
  %305 = vadd.xlane.f32.xlu0 %v304
  %v306 = vpop.xlane.xlu0 %305
  %v307 = vsel %vm56, %v241, 0.0
  %308 = vadd.xlane.f32.xlu0 %v307
  %v309 = vpop.xlane.xlu0 %308
  %v310 = vsel %vm56, %v242, 0.0
  %311 = vadd.xlane.f32.xlu0 %v310
  %v312 = vpop.xlane.xlu0 %311
  %v313 = vsel %vm56, %v243, 0.0
  %314 = vadd.xlane.f32.xlu0 %v313
  %v315 = vpop.xlane.xlu0 %314
  %v316 = vsel %vm56, %v244, 0.0
  %317 = vadd.xlane.f32.xlu0 %v316
  %v318 = vpop.xlane.xlu0 %317
  %v319 = vsel %vm56, %v245, 0.0
  %320 = vadd.xlane.f32.xlu0 %v319
  %v321 = vpop.xlane.xlu0 %320
  %v322 = vsel %vm56, %v246, 0.0
  %323 = vadd.xlane.f32.xlu0 %v322
  %v324 = vpop.xlane.xlu0 %323
  %v325 = vsel %vm56, %v247, 0.0
  %326 = vadd.xlane.f32.xlu0 %v325
  %v327 = vpop.xlane.xlu0 %326
  %v328 = vsel %vm56, %v248, 0.0
  %329 = vadd.xlane.f32.xlu0 %v328
  %v330 = vpop.xlane.xlu0 %329
  %v331 = vsel %vm56, %v249, 0.0
  %332 = vadd.xlane.f32.xlu0 %v331
  %v333 = vpop.xlane.xlu0 %332
  %v334 = vsel %vm56, %v250, 0.0
  %335 = vadd.xlane.f32.xlu0 %v334
  %v336 = vpop.xlane.xlu0 %335
  %v337 = vsel %vm56, %v251, 0.0
  %338 = vadd.xlane.f32.xlu0 %v337
  %v339 = vpop.xlane.xlu0 %338
  %v340 = vsel %vm56, %v252, 0.0
  %341 = vadd.xlane.f32.xlu0 %v340
  %v342 = vpop.xlane.xlu0 %341
  %v343 = vsel %vm56, %v253, 0.0
  %344 = vadd.xlane.f32.xlu0 %v343
  %v345 = vpop.xlane.xlu0 %344
  %v346 = vsel %vm56, %v254, 0.0
  %347 = vadd.xlane.f32.xlu0 %v346
  %v348 = vpop.xlane.xlu0 %347
  %v349 = vsel %vm56, %v255, 0.0
  %350 = vadd.xlane.f32.xlu0 %v349
  %v351 = vpop.xlane.xlu0 %350
  %v352 = vmul.f32 %v258, %v159
  %v353 = vmul.f32 %v261, %v159
  %v354 = vmul.f32 %v264, %v159
  %v355 = vmul.f32 %v267, %v159
  %v356 = vmul.f32 %v270, %v159
  %v357 = vmul.f32 %v273, %v159
  %v358 = vmul.f32 %v276, %v159
  %v359 = vmul.f32 %v279, %v159
  %v360 = vmul.f32 %v282, %v159
  %v361 = vmul.f32 %v285, %v159
  %v362 = vmul.f32 %v288, %v159
  %v363 = vmul.f32 %v291, %v159
  %v364 = vmul.f32 %v294, %v159
  %v365 = vmul.f32 %v297, %v159
  %v366 = vmul.f32 %v300, %v159
  %v367 = vmul.f32 %v303, %v159
  %v368 = vmul.f32 %v306, %v159
  %v369 = vmul.f32 %v309, %v159
  %v370 = vmul.f32 %v312, %v159
  %v371 = vmul.f32 %v315, %v159
  %v372 = vmul.f32 %v318, %v159
  %v373 = vmul.f32 %v321, %v159
  %v374 = vmul.f32 %v324, %v159
  %v375 = vmul.f32 %v327, %v159
  %v376 = vmul.f32 %v330, %v159
  %v377 = vmul.f32 %v333, %v159
  %v378 = vmul.f32 %v336, %v159
  %v379 = vmul.f32 %v339, %v159
  %v380 = vmul.f32 %v342, %v159
  %v381 = vmul.f32 %v345, %v159
  %v382 = vmul.f32 %v348, %v159
  %v383 = vmul.f32 %v351, %v159
  %v384 = vadd.f32 %v352, 1e-05
  %v385 = vadd.f32 %v353, 1e-05
  %v386 = vadd.f32 %v354, 1e-05
  %v387 = vadd.f32 %v355, 1e-05
  %v388 = vadd.f32 %v356, 1e-05
  %v389 = vadd.f32 %v357, 1e-05
  %v390 = vadd.f32 %v358, 1e-05
  %v391 = vadd.f32 %v359, 1e-05
  %v392 = vadd.f32 %v360, 1e-05
  %v393 = vadd.f32 %v361, 1e-05
  %v394 = vadd.f32 %v362, 1e-05
  %v395 = vadd.f32 %v363, 1e-05
  %v396 = vadd.f32 %v364, 1e-05
  %v397 = vadd.f32 %v365, 1e-05
  %v398 = vadd.f32 %v366, 1e-05
  %v399 = vadd.f32 %v367, 1e-05
  %v400 = vadd.f32 %v368, 1e-05
  %v401 = vadd.f32 %v369, 1e-05
  %v402 = vadd.f32 %v370, 1e-05
  %v403 = vadd.f32 %v371, 1e-05
  %v404 = vadd.f32 %v372, 1e-05
  %v405 = vadd.f32 %v373, 1e-05
  %v406 = vadd.f32 %v374, 1e-05
  %v407 = vadd.f32 %v375, 1e-05
  %v408 = vadd.f32 %v376, 1e-05
  %v409 = vadd.f32 %v377, 1e-05
  %v410 = vadd.f32 %v378, 1e-05
  %v411 = vadd.f32 %v379, 1e-05
  %v412 = vadd.f32 %v380, 1e-05
  %v413 = vadd.f32 %v381, 1e-05
  %v414 = vadd.f32 %v382, 1e-05
  %v415 = vadd.f32 %v383, 1e-05
  %v416 = vrsqrt.pop %v384
  %v417 = vmul.f32 %v416, %v384
  %v418 = vmul.f32 %v417, %v416
  %v419 = vmul.f32 0.5, %v418
  %v420 = vsub.f32 1.5, %v419
  %v421 = vmul.f32 %v416, %v420
  %vm422 = vweird.f32 %v384
  %vm423 = vweird.f32 %v416
  %vm424 = vmor %vm422, %vm423
  %v425 = vsel %vm424, %v416, %v421
  %v426 = vrsqrt.pop %v385
  %v427 = vmul.f32 %v426, %v385
  %v428 = vmul.f32 %v427, %v426
  %v429 = vmul.f32 0.5, %v428
  %v430 = vsub.f32 1.5, %v429
  %v431 = vmul.f32 %v426, %v430
  %vm432 = vweird.f32 %v385
  %vm433 = vweird.f32 %v426
  %vm434 = vmor %vm432, %vm433
  %v435 = vsel %vm434, %v426, %v431
  %v436 = vrsqrt.pop %v386
  %v437 = vmul.f32 %v436, %v386
  %v438 = vmul.f32 %v437, %v436
  %v439 = vmul.f32 0.5, %v438
  %v440 = vsub.f32 1.5, %v439
  %v441 = vmul.f32 %v436, %v440
  %vm442 = vweird.f32 %v386
  %vm443 = vweird.f32 %v436
  %vm444 = vmor %vm442, %vm443
  %v445 = vsel %vm444, %v436, %v441
  %v446 = vrsqrt.pop %v387
  %v447 = vmul.f32 %v446, %v387
  %v448 = vmul.f32 %v447, %v446
  %v449 = vmul.f32 0.5, %v448
  %v450 = vsub.f32 1.5, %v449
  %v451 = vmul.f32 %v446, %v450
  %vm452 = vweird.f32 %v387
  %vm453 = vweird.f32 %v446
  %vm454 = vmor %vm452, %vm453
  %v455 = vsel %vm454, %v446, %v451
  %v456 = vrsqrt.pop %v388
  %v457 = vmul.f32 %v456, %v388
  %v458 = vmul.f32 %v457, %v456
  %v459 = vmul.f32 0.5, %v458
  %v460 = vsub.f32 1.5, %v459
  %v461 = vmul.f32 %v456, %v460
  %vm462 = vweird.f32 %v388
  %vm463 = vweird.f32 %v456
  %vm464 = vmor %vm462, %vm463
  %v465 = vsel %vm464, %v456, %v461
  %v466 = vrsqrt.pop %v389
  %v467 = vmul.f32 %v466, %v389
  %v468 = vmul.f32 %v467, %v466
  %v469 = vmul.f32 0.5, %v468
  %v470 = vsub.f32 1.5, %v469
  %v471 = vmul.f32 %v466, %v470
  %vm472 = vweird.f32 %v389
  %vm473 = vweird.f32 %v466
  %vm474 = vmor %vm472, %vm473
  %v475 = vsel %vm474, %v466, %v471
  %v476 = vrsqrt.pop %v390
  %v477 = vmul.f32 %v476, %v390
  %v478 = vmul.f32 %v477, %v476
  %v479 = vmul.f32 0.5, %v478
  %v480 = vsub.f32 1.5, %v479
  %v481 = vmul.f32 %v476, %v480
  %vm482 = vweird.f32 %v390
  %vm483 = vweird.f32 %v476
  %vm484 = vmor %vm482, %vm483
  %v485 = vsel %vm484, %v476, %v481
  %v486 = vrsqrt.pop %v391
  %v487 = vmul.f32 %v486, %v391
  %v488 = vmul.f32 %v487, %v486
  %v489 = vmul.f32 0.5, %v488
  %v490 = vsub.f32 1.5, %v489
  %v491 = vmul.f32 %v486, %v490
  %vm492 = vweird.f32 %v391
  %vm493 = vweird.f32 %v486
  %vm494 = vmor %vm492, %vm493
  %v495 = vsel %vm494, %v486, %v491
  %v496 = vrsqrt.pop %v392
  %v497 = vmul.f32 %v496, %v392
  %v498 = vmul.f32 %v497, %v496
  %v499 = vmul.f32 0.5, %v498
  %v500 = vsub.f32 1.5, %v499
  %v501 = vmul.f32 %v496, %v500
  %vm502 = vweird.f32 %v392
  %vm503 = vweird.f32 %v496
  %vm504 = vmor %vm502, %vm503
  %v505 = vsel %vm504, %v496, %v501
  %v506 = vrsqrt.pop %v393
  %v507 = vmul.f32 %v506, %v393
  %v508 = vmul.f32 %v507, %v506
  %v509 = vmul.f32 0.5, %v508
  %v510 = vsub.f32 1.5, %v509
  %v511 = vmul.f32 %v506, %v510
  %vm512 = vweird.f32 %v393
  %vm513 = vweird.f32 %v506
  %vm514 = vmor %vm512, %vm513
  %v515 = vsel %vm514, %v506, %v511
  %v516 = vrsqrt.pop %v394
  %v517 = vmul.f32 %v516, %v394
  %v518 = vmul.f32 %v517, %v516
  %v519 = vmul.f32 0.5, %v518
  %v520 = vsub.f32 1.5, %v519
  %v521 = vmul.f32 %v516, %v520
  %vm522 = vweird.f32 %v394
  %vm523 = vweird.f32 %v516
  %vm524 = vmor %vm522, %vm523
  %v525 = vsel %vm524, %v516, %v521
  %v526 = vrsqrt.pop %v395
  %v527 = vmul.f32 %v526, %v395
  %v528 = vmul.f32 %v527, %v526
  %v529 = vmul.f32 0.5, %v528
  %v530 = vsub.f32 1.5, %v529
  %v531 = vmul.f32 %v526, %v530
  %vm532 = vweird.f32 %v395
  %vm533 = vweird.f32 %v526
  %vm534 = vmor %vm532, %vm533
  %v535 = vsel %vm534, %v526, %v531
  %v536 = vrsqrt.pop %v396
  %v537 = vmul.f32 %v536, %v396
  %v538 = vmul.f32 %v537, %v536
  %v539 = vmul.f32 0.5, %v538
  %v540 = vsub.f32 1.5, %v539
  %v541 = vmul.f32 %v536, %v540
  %vm542 = vweird.f32 %v396
  %vm543 = vweird.f32 %v536
  %vm544 = vmor %vm542, %vm543
  %v545 = vsel %vm544, %v536, %v541
  %v546 = vrsqrt.pop %v397
  %v547 = vmul.f32 %v546, %v397
  %v548 = vmul.f32 %v547, %v546
  %v549 = vmul.f32 0.5, %v548
  %v550 = vsub.f32 1.5, %v549
  %v551 = vmul.f32 %v546, %v550
  %vm552 = vweird.f32 %v397
  %vm553 = vweird.f32 %v546
  %vm554 = vmor %vm552, %vm553
  %v555 = vsel %vm554, %v546, %v551
  %v556 = vrsqrt.pop %v398
  %v557 = vmul.f32 %v556, %v398
  %v558 = vmul.f32 %v557, %v556
  %v559 = vmul.f32 0.5, %v558
  %v560 = vsub.f32 1.5, %v559
  %v561 = vmul.f32 %v556, %v560
  %vm562 = vweird.f32 %v398
  %vm563 = vweird.f32 %v556
  %vm564 = vmor %vm562, %vm563
  %v565 = vsel %vm564, %v556, %v561
  %v566 = vrsqrt.pop %v399
  %v567 = vmul.f32 %v566, %v399
  %v568 = vmul.f32 %v567, %v566
  %v569 = vmul.f32 0.5, %v568
  %v570 = vsub.f32 1.5, %v569
  %v571 = vmul.f32 %v566, %v570
  %vm572 = vweird.f32 %v399
  %vm573 = vweird.f32 %v566
  %vm574 = vmor %vm572, %vm573
  %v575 = vsel %vm574, %v566, %v571
  %v576 = vrsqrt.pop %v400
  %v577 = vmul.f32 %v576, %v400
  %v578 = vmul.f32 %v577, %v576
  %v579 = vmul.f32 0.5, %v578
  %v580 = vsub.f32 1.5, %v579
  %v581 = vmul.f32 %v576, %v580
  %vm582 = vweird.f32 %v400
  %vm583 = vweird.f32 %v576
  %vm584 = vmor %vm582, %vm583
  %v585 = vsel %vm584, %v576, %v581
  %v586 = vrsqrt.pop %v401
  %v587 = vmul.f32 %v586, %v401
  %v588 = vmul.f32 %v587, %v586
  %v589 = vmul.f32 0.5, %v588
  %v590 = vsub.f32 1.5, %v589
  %v591 = vmul.f32 %v586, %v590
  %vm592 = vweird.f32 %v401
  %vm593 = vweird.f32 %v586
  %vm594 = vmor %vm592, %vm593
  %v595 = vsel %vm594, %v586, %v591
  %v596 = vrsqrt.pop %v402
  %v597 = vmul.f32 %v596, %v402
  %v598 = vmul.f32 %v597, %v596
  %v599 = vmul.f32 0.5, %v598
  %v600 = vsub.f32 1.5, %v599
  %v601 = vmul.f32 %v596, %v600
  %vm602 = vweird.f32 %v402
  %vm603 = vweird.f32 %v596
  %vm604 = vmor %vm602, %vm603
  %v605 = vsel %vm604, %v596, %v601
  %v606 = vrsqrt.pop %v403
  %v607 = vmul.f32 %v606, %v403
  %v608 = vmul.f32 %v607, %v606
  %v609 = vmul.f32 0.5, %v608
  %v610 = vsub.f32 1.5, %v609
  %v611 = vmul.f32 %v606, %v610
  %vm612 = vweird.f32 %v403
  %vm613 = vweird.f32 %v606
  %vm614 = vmor %vm612, %vm613
  %v615 = vsel %vm614, %v606, %v611
  %v616 = vrsqrt.pop %v404
  %v617 = vmul.f32 %v616, %v404
  %v618 = vmul.f32 %v617, %v616
  %v619 = vmul.f32 0.5, %v618
  %v620 = vsub.f32 1.5, %v619
  %v621 = vmul.f32 %v616, %v620
  %vm622 = vweird.f32 %v404
  %vm623 = vweird.f32 %v616
  %vm624 = vmor %vm622, %vm623
  %v625 = vsel %vm624, %v616, %v621
  %v626 = vrsqrt.pop %v405
  %v627 = vmul.f32 %v626, %v405
  %v628 = vmul.f32 %v627, %v626
  %v629 = vmul.f32 0.5, %v628
  %v630 = vsub.f32 1.5, %v629
  %v631 = vmul.f32 %v626, %v630
  %vm632 = vweird.f32 %v405
  %vm633 = vweird.f32 %v626
  %vm634 = vmor %vm632, %vm633
  %v635 = vsel %vm634, %v626, %v631
  %v636 = vrsqrt.pop %v406
  %v637 = vmul.f32 %v636, %v406
  %v638 = vmul.f32 %v637, %v636
  %v639 = vmul.f32 0.5, %v638
  %v640 = vsub.f32 1.5, %v639
  %v641 = vmul.f32 %v636, %v640
  %vm642 = vweird.f32 %v406
  %vm643 = vweird.f32 %v636
  %vm644 = vmor %vm642, %vm643
  %v645 = vsel %vm644, %v636, %v641
  %v646 = vrsqrt.pop %v407
  %v647 = vmul.f32 %v646, %v407
  %v648 = vmul.f32 %v647, %v646
  %v649 = vmul.f32 0.5, %v648
  %v650 = vsub.f32 1.5, %v649
  %v651 = vmul.f32 %v646, %v650
  %vm652 = vweird.f32 %v407
  %vm653 = vweird.f32 %v646
  %vm654 = vmor %vm652, %vm653
  %v655 = vsel %vm654, %v646, %v651
  %v656 = vrsqrt.pop %v408
  %v657 = vmul.f32 %v656, %v408
  %v658 = vmul.f32 %v657, %v656
  %v659 = vmul.f32 0.5, %v658
  %v660 = vsub.f32 1.5, %v659
  %v661 = vmul.f32 %v656, %v660
  %vm662 = vweird.f32 %v408
  %vm663 = vweird.f32 %v656
  %vm664 = vmor %vm662, %vm663
  %v665 = vsel %vm664, %v656, %v661
  %v666 = vrsqrt.pop %v409
  %v667 = vmul.f32 %v666, %v409
  %v668 = vmul.f32 %v667, %v666
  %v669 = vmul.f32 0.5, %v668
  %v670 = vsub.f32 1.5, %v669
  %v671 = vmul.f32 %v666, %v670
  %vm672 = vweird.f32 %v409
  %vm673 = vweird.f32 %v666
  %vm674 = vmor %vm672, %vm673
  %v675 = vsel %vm674, %v666, %v671
  %v676 = vrsqrt.pop %v410
  %v677 = vmul.f32 %v676, %v410
  %v678 = vmul.f32 %v677, %v676
  %v679 = vmul.f32 0.5, %v678
  %v680 = vsub.f32 1.5, %v679
  %v681 = vmul.f32 %v676, %v680
  %vm682 = vweird.f32 %v410
  %vm683 = vweird.f32 %v676
  %vm684 = vmor %vm682, %vm683
  %v685 = vsel %vm684, %v676, %v681
  %v686 = vrsqrt.pop %v411
  %v687 = vmul.f32 %v686, %v411
  %v688 = vmul.f32 %v687, %v686
  %v689 = vmul.f32 0.5, %v688
  %v690 = vsub.f32 1.5, %v689
  %v691 = vmul.f32 %v686, %v690
  %vm692 = vweird.f32 %v411
  %vm693 = vweird.f32 %v686
  %vm694 = vmor %vm692, %vm693
  %v695 = vsel %vm694, %v686, %v691
  %v696 = vrsqrt.pop %v412
  %v697 = vmul.f32 %v696, %v412
  %v698 = vmul.f32 %v697, %v696
  %v699 = vmul.f32 0.5, %v698
  %v700 = vsub.f32 1.5, %v699
  %v701 = vmul.f32 %v696, %v700
  %vm702 = vweird.f32 %v412
  %vm703 = vweird.f32 %v696
  %vm704 = vmor %vm702, %vm703
  %v705 = vsel %vm704, %v696, %v701
  %v706 = vrsqrt.pop %v413
  %v707 = vmul.f32 %v706, %v413
  %v708 = vmul.f32 %v707, %v706
  %v709 = vmul.f32 0.5, %v708
  %v710 = vsub.f32 1.5, %v709
  %v711 = vmul.f32 %v706, %v710
  %vm712 = vweird.f32 %v413
  %vm713 = vweird.f32 %v706
  %vm714 = vmor %vm712, %vm713
  %v715 = vsel %vm714, %v706, %v711
  %v716 = vrsqrt.pop %v414
  %v717 = vmul.f32 %v716, %v414
  %v718 = vmul.f32 %v717, %v716
  %v719 = vmul.f32 0.5, %v718
  %v720 = vsub.f32 1.5, %v719
  %v721 = vmul.f32 %v716, %v720
  %vm722 = vweird.f32 %v414
  %vm723 = vweird.f32 %v716
  %vm724 = vmor %vm722, %vm723
  %v725 = vsel %vm724, %v716, %v721
  %v726 = vrsqrt.pop %v415
  %v727 = vmul.f32 %v726, %v415
  %v728 = vmul.f32 %v727, %v726
  %v729 = vmul.f32 0.5, %v728
  %v730 = vsub.f32 1.5, %v729
  %v731 = vmul.f32 %v726, %v730
  %vm732 = vweird.f32 %v415
  %vm733 = vweird.f32 %v726
  %vm734 = vmor %vm732, %vm733
  %v735 = vsel %vm734, %v726, %v731
  %v736 = vmul.f32 %v192, %v425
  %v737 = vmul.f32 %v193, %v435
  %v738 = vmul.f32 %v194, %v445
  %v739 = vmul.f32 %v195, %v455
  %v740 = vmul.f32 %v196, %v465
  %v741 = vmul.f32 %v197, %v475
  %v742 = vmul.f32 %v198, %v485
  %v743 = vmul.f32 %v199, %v495
  %v744 = vmul.f32 %v200, %v505
  %v745 = vmul.f32 %v201, %v515
  %v746 = vmul.f32 %v202, %v525
  %v747 = vmul.f32 %v203, %v535
  %v748 = vmul.f32 %v204, %v545
  %v749 = vmul.f32 %v205, %v555
  %v750 = vmul.f32 %v206, %v565
  %v751 = vmul.f32 %v207, %v575
  %v752 = vmul.f32 %v208, %v585
  %v753 = vmul.f32 %v209, %v595
  %v754 = vmul.f32 %v210, %v605
  %v755 = vmul.f32 %v211, %v615
  %v756 = vmul.f32 %v212, %v625
  %v757 = vmul.f32 %v213, %v635
  %v758 = vmul.f32 %v214, %v645
  %v759 = vmul.f32 %v215, %v655
  %v760 = vmul.f32 %v216, %v665
  %v761 = vmul.f32 %v217, %v675
  %v762 = vmul.f32 %v218, %v685
  %v763 = vmul.f32 %v219, %v695
  %v764 = vmul.f32 %v220, %v705
  %v765 = vmul.f32 %v221, %v715
  %v766 = vmul.f32 %v222, %v725
  %v767 = vmul.f32 %v223, %v735
  %v768 = vld [vmem:[%s1] sm:$0x1]
  %v770 = vperm.slane %v768, 0
  %v772 = vmul.f32 %v736, %v770
  %v773 = vmul.f32 %v737, %v770
  %v774 = vmul.f32 %v738, %v770
  %v775 = vmul.f32 %v739, %v770
  %v776 = vmul.f32 %v740, %v770
  %v777 = vmul.f32 %v741, %v770
  %v778 = vmul.f32 %v742, %v770
  %v779 = vmul.f32 %v743, %v770
  %v780 = vmul.f32 %v744, %v770
  %v781 = vmul.f32 %v745, %v770
  %v782 = vmul.f32 %v746, %v770
  %v783 = vmul.f32 %v747, %v770
  %v784 = vmul.f32 %v748, %v770
  %v785 = vmul.f32 %v749, %v770
  %v786 = vmul.f32 %v750, %v770
  %v787 = vmul.f32 %v751, %v770
  %v788 = vmul.f32 %v752, %v770
  %v789 = vmul.f32 %v753, %v770
  %v790 = vmul.f32 %v754, %v770
  %v791 = vmul.f32 %v755, %v770
  %v792 = vmul.f32 %v756, %v770
  %v793 = vmul.f32 %v757, %v770
  %v794 = vmul.f32 %v758, %v770
  %v795 = vmul.f32 %v759, %v770
  %v796 = vmul.f32 %v760, %v770
  %v797 = vmul.f32 %v761, %v770
  %v798 = vmul.f32 %v762, %v770
  %v799 = vmul.f32 %v763, %v770
  %v800 = vmul.f32 %v764, %v770
  %v801 = vmul.f32 %v765, %v770
  %v802 = vmul.f32 %v766, %v770
  %v803 = vmul.f32 %v767, %v770
  %v804 = vld [vmem:[%s2] sm:$0x1]
  %v806 = vperm.slane %v804, 0
  %v808 = vadd.f32 %v772, %v806
  %v809 = vadd.f32 %v773, %v806
  %v810 = vadd.f32 %v774, %v806
  %v811 = vadd.f32 %v775, %v806
  %v812 = vadd.f32 %v776, %v806
  %v813 = vadd.f32 %v777, %v806
  %v814 = vadd.f32 %v778, %v806
  %v815 = vadd.f32 %v779, %v806
  %v816 = vadd.f32 %v780, %v806
  %v817 = vadd.f32 %v781, %v806
  %v818 = vadd.f32 %v782, %v806
  %v819 = vadd.f32 %v783, %v806
  %v820 = vadd.f32 %v784, %v806
  %v821 = vadd.f32 %v785, %v806
  %v822 = vadd.f32 %v786, %v806
  %v823 = vadd.f32 %v787, %v806
  %v824 = vadd.f32 %v788, %v806
  %v825 = vadd.f32 %v789, %v806
  %v826 = vadd.f32 %v790, %v806
  %v827 = vadd.f32 %v791, %v806
  %v828 = vadd.f32 %v792, %v806
  %v829 = vadd.f32 %v793, %v806
  %v830 = vadd.f32 %v794, %v806
  %v831 = vadd.f32 %v795, %v806
  %v832 = vadd.f32 %v796, %v806
  %v833 = vadd.f32 %v797, %v806
  %v834 = vadd.f32 %v798, %v806
  %v835 = vadd.f32 %v799, %v806
  %v836 = vadd.f32 %v800, %v806
  %v837 = vadd.f32 %v801, %v806
  %v838 = vadd.f32 %v802, %v806
  %v839 = vadd.f32 %v803, %v806
  %v840 = vpack.c.bf16 %v809, %v808
  %v841 = vpack.c.bf16 %v811, %v810
  %v842 = vpack.c.bf16 %v813, %v812
  %v843 = vpack.c.bf16 %v815, %v814
  %v844 = vpack.c.bf16 %v817, %v816
  %v845 = vpack.c.bf16 %v819, %v818
  %v846 = vpack.c.bf16 %v821, %v820
  %v847 = vpack.c.bf16 %v823, %v822
  %v848 = vpack.c.bf16 %v825, %v824
  %v849 = vpack.c.bf16 %v827, %v826
  %v850 = vpack.c.bf16 %v829, %v828
  %v851 = vpack.c.bf16 %v831, %v830
  %v852 = vpack.c.bf16 %v833, %v832
  %v853 = vpack.c.bf16 %v835, %v834
  %v854 = vpack.c.bf16 %v837, %v836
  %v855 = vpack.c.bf16 %v839, %v838
  %v856 = vld [vmem:[%s3] sm:$0xf]
  %v857 = vld [vmem:[%s3 + $0x4] sm:$0xf]
  %v858 = vld [vmem:[%s3 + $0x8] sm:$0xf]
  %v859 = vld [vmem:[%s3 + $0xc] sm:$0xf]
  %v860 = vld [vmem:[%s4] sm:$0x1]
  %v862 = vperm.slane %v860, 0
  %v868 = vunpack.c.l.b16 %v856
  %v869 = vunpack.c.l.b16 %v857
  %v870 = vunpack.c.l.b16 %v858
  %v871 = vunpack.c.l.b16 %v859
  %v872 = vpack.c.b16 %v869, %v868
  %v873 = vpack.c.b16 %v871, %v870
  %v877 = vsel %vm56, %v840, 0
  %v880 = vsel %vm56, %v841, 0
  %v883 = vsel %vm56, %v842, 0
  %v886 = vsel %vm56, %v843, 0
  %v889 = vsel %vm56, %v844, 0
  %v892 = vsel %vm56, %v845, 0
  %v895 = vsel %vm56, %v846, 0
  %v898 = vsel %vm56, %v847, 0
  %v901 = vsel %vm56, %v848, 0
  %v904 = vsel %vm56, %v849, 0
  %v907 = vsel %vm56, %v850, 0
  %v910 = vsel %vm56, %v851, 0
  %v913 = vsel %vm56, %v852, 0
  %v916 = vsel %vm56, %v853, 0
  %v919 = vsel %vm56, %v854, 0
  %v922 = vsel %vm56, %v855, 0
  %924 = vmatpush.bf16.msra.mxu0 0
  %925 = vmatpush.bf16.msra.mxu0 0
  %926 = vmatpush.bf16.msra.mxu0 0
  %927 = vmatpush.bf16.msra.mxu0 0
  %928 = vmatpush.bf16.msra.mxu0 0
  %929 = vmatpush.bf16.msra.mxu0 0
  %930 = vmatpush.bf16.msra.mxu0 %v873
  %931 = vmatpush.bf16.msra.mxu0 %v872
  %932 = vmatmul.bf16.gmra.mxu0 %v877
  %v933 = vpop.f32.mrf.mxu0
  %v934 = vadd.f32 %v862, %v933
  %v935 = vpop.f32.mrf.mxu0
  %v936 = vadd.f32 %v862, %v935
  %937 = vmatmul.bf16.gmra.mxu0 %v880
  %v938 = vpop.f32.mrf.mxu0
  %v939 = vadd.f32 %v862, %v938
  %v940 = vpop.f32.mrf.mxu0
  %v941 = vadd.f32 %v862, %v940
  %942 = vmatmul.bf16.gmra.mxu0 %v883
  %v943 = vpop.f32.mrf.mxu0
  %v944 = vadd.f32 %v862, %v943
  %v945 = vpop.f32.mrf.mxu0
  %v946 = vadd.f32 %v862, %v945
  %947 = vmatmul.bf16.gmra.mxu0 %v886
  %v948 = vpop.f32.mrf.mxu0
  %v949 = vadd.f32 %v862, %v948
  %v950 = vpop.f32.mrf.mxu0
  %v951 = vadd.f32 %v862, %v950
  %952 = vmatmul.bf16.gmra.mxu0 %v889
  %v953 = vpop.f32.mrf.mxu0
  %v954 = vadd.f32 %v862, %v953
  %v955 = vpop.f32.mrf.mxu0
  %v956 = vadd.f32 %v862, %v955
  %957 = vmatmul.bf16.gmra.mxu0 %v892
  %v958 = vpop.f32.mrf.mxu0
  %v959 = vadd.f32 %v862, %v958
  %v960 = vpop.f32.mrf.mxu0
  %v961 = vadd.f32 %v862, %v960
  %962 = vmatmul.bf16.gmra.mxu0 %v895
  %v963 = vpop.f32.mrf.mxu0
  %v964 = vadd.f32 %v862, %v963
  %v965 = vpop.f32.mrf.mxu0
  %v966 = vadd.f32 %v862, %v965
  %967 = vmatmul.bf16.gmra.mxu0 %v898
  %v968 = vpop.f32.mrf.mxu0
  %v969 = vadd.f32 %v862, %v968
  %v970 = vpop.f32.mrf.mxu0
  %v971 = vadd.f32 %v862, %v970
  %972 = vmatmul.bf16.gmra.mxu0 %v901
  %v973 = vpop.f32.mrf.mxu0
  %v974 = vadd.f32 %v862, %v973
  %v975 = vpop.f32.mrf.mxu0
  %v976 = vadd.f32 %v862, %v975
  %977 = vmatmul.bf16.gmra.mxu0 %v904
  %v978 = vpop.f32.mrf.mxu0
  %v979 = vadd.f32 %v862, %v978
  %v980 = vpop.f32.mrf.mxu0
  %v981 = vadd.f32 %v862, %v980
  %982 = vmatmul.bf16.gmra.mxu0 %v907
  %v983 = vpop.f32.mrf.mxu0
  %v984 = vadd.f32 %v862, %v983
  %v985 = vpop.f32.mrf.mxu0
  %v986 = vadd.f32 %v862, %v985
  %987 = vmatmul.bf16.gmra.mxu0 %v910
  %v988 = vpop.f32.mrf.mxu0
  %v989 = vadd.f32 %v862, %v988
  %v990 = vpop.f32.mrf.mxu0
  %v991 = vadd.f32 %v862, %v990
  %992 = vmatmul.bf16.gmra.mxu0 %v913
  %v993 = vpop.f32.mrf.mxu0
  %v994 = vadd.f32 %v862, %v993
  %v995 = vpop.f32.mrf.mxu0
  %v996 = vadd.f32 %v862, %v995
  %997 = vmatmul.bf16.gmra.mxu0 %v916
  %v998 = vpop.f32.mrf.mxu0
  %v999 = vadd.f32 %v862, %v998
  %v1000 = vpop.f32.mrf.mxu0
  %v1001 = vadd.f32 %v862, %v1000
  %1002 = vmatmul.bf16.gmra.mxu0 %v919
  %v1003 = vpop.f32.mrf.mxu0
  %v1004 = vadd.f32 %v862, %v1003
  %v1005 = vpop.f32.mrf.mxu0
  %v1006 = vadd.f32 %v862, %v1005
  %1007 = vmatmul.bf16.gmra.mxu0 %v922
  %v1008 = vpop.f32.mrf.mxu0
  %v1009 = vadd.f32 %v862, %v1008
  %v1010 = vpop.f32.mrf.mxu0
  %v1011 = vadd.f32 %v862, %v1010
  %1012 = vdwg.mxu0
  %v1013 = vpack.c.bf16 %v934, %v934
  %v1014 = vpack.c.bf16 %v936, %v936
  %v1015 = vpack.c.bf16 %v939, %v939
  %v1016 = vpack.c.bf16 %v941, %v941
  %v1017 = vpack.c.bf16 %v944, %v944
  %v1018 = vpack.c.bf16 %v946, %v946
  %v1019 = vpack.c.bf16 %v949, %v949
  %v1020 = vpack.c.bf16 %v951, %v951
  %v1021 = vpack.c.bf16 %v954, %v954
  %v1022 = vpack.c.bf16 %v956, %v956
  %v1023 = vpack.c.bf16 %v959, %v959
  %v1024 = vpack.c.bf16 %v961, %v961
  %v1025 = vpack.c.bf16 %v964, %v964
  %v1026 = vpack.c.bf16 %v966, %v966
  %v1027 = vpack.c.bf16 %v969, %v969
  %v1028 = vpack.c.bf16 %v971, %v971
  %v1029 = vpack.c.bf16 %v974, %v974
  %v1030 = vpack.c.bf16 %v976, %v976
  %v1031 = vpack.c.bf16 %v979, %v979
  %v1032 = vpack.c.bf16 %v981, %v981
  %v1033 = vpack.c.bf16 %v984, %v984
  %v1034 = vpack.c.bf16 %v986, %v986
  %v1035 = vpack.c.bf16 %v989, %v989
  %v1036 = vpack.c.bf16 %v991, %v991
  %v1037 = vpack.c.bf16 %v994, %v994
  %v1038 = vpack.c.bf16 %v996, %v996
  %v1039 = vpack.c.bf16 %v999, %v999
  %v1040 = vpack.c.bf16 %v1001, %v1001
  %v1041 = vpack.c.bf16 %v1004, %v1004
  %v1042 = vpack.c.bf16 %v1006, %v1006
  %v1043 = vpack.c.bf16 %v1009, %v1009
  %v1044 = vpack.c.bf16 %v1011, %v1011
  %vm1045 = vcmask 257024
  %1046 = vst.msk [vmem:[%s5] sm:$0xf] %vm1045, %v1013
  %1047 = vst.msk [vmem:[%s5 + $0x4] sm:$0xf] %vm1045, %v1014
  %1048 = vst.msk [vmem:[%s5 + $0x8] sm:$0xf] %vm1045, %v1015
  %1049 = vst.msk [vmem:[%s5 + $0xc] sm:$0xf] %vm1045, %v1016
  %1050 = vst.msk [vmem:[%s5 + $0x10] sm:$0xf] %vm1045, %v1017
  %1051 = vst.msk [vmem:[%s5 + $0x14] sm:$0xf] %vm1045, %v1018
  %1052 = vst.msk [vmem:[%s5 + $0x18] sm:$0xf] %vm1045, %v1019
  %1053 = vst.msk [vmem:[%s5 + $0x1c] sm:$0xf] %vm1045, %v1020
  %1054 = vst.msk [vmem:[%s5 + $0x20] sm:$0xf] %vm1045, %v1021
  %1055 = vst.msk [vmem:[%s5 + $0x24] sm:$0xf] %vm1045, %v1022
  %1056 = vst.msk [vmem:[%s5 + $0x28] sm:$0xf] %vm1045, %v1023
  %1057 = vst.msk [vmem:[%s5 + $0x2c] sm:$0xf] %vm1045, %v1024
  %1058 = vst.msk [vmem:[%s5 + $0x30] sm:$0xf] %vm1045, %v1025
  %1059 = vst.msk [vmem:[%s5 + $0x34] sm:$0xf] %vm1045, %v1026
  %1060 = vst.msk [vmem:[%s5 + $0x38] sm:$0xf] %vm1045, %v1027
  %1061 = vst.msk [vmem:[%s5 + $0x3c] sm:$0xf] %vm1045, %v1028
  %1062 = vst.msk [vmem:[%s5 + $0x40] sm:$0xf] %vm1045, %v1029
  %1063 = vst.msk [vmem:[%s5 + $0x44] sm:$0xf] %vm1045, %v1030
  %1064 = vst.msk [vmem:[%s5 + $0x48] sm:$0xf] %vm1045, %v1031
  %1065 = vst.msk [vmem:[%s5 + $0x4c] sm:$0xf] %vm1045, %v1032
  %1066 = vst.msk [vmem:[%s5 + $0x50] sm:$0xf] %vm1045, %v1033
  %1067 = vst.msk [vmem:[%s5 + $0x54] sm:$0xf] %vm1045, %v1034
  %1068 = vst.msk [vmem:[%s5 + $0x58] sm:$0xf] %vm1045, %v1035
  %1069 = vst.msk [vmem:[%s5 + $0x5c] sm:$0xf] %vm1045, %v1036
  %1070 = vst.msk [vmem:[%s5 + $0x60] sm:$0xf] %vm1045, %v1037
  %1071 = vst.msk [vmem:[%s5 + $0x64] sm:$0xf] %vm1045, %v1038
  %1072 = vst.msk [vmem:[%s5 + $0x68] sm:$0xf] %vm1045, %v1039
  %1073 = vst.msk [vmem:[%s5 + $0x6c] sm:$0xf] %vm1045, %v1040
  %1074 = vst.msk [vmem:[%s5 + $0x70] sm:$0xf] %vm1045, %v1041
  %1075 = vst.msk [vmem:[%s5 + $0x74] sm:$0xf] %vm1045, %v1042
  %1076 = vst.msk [vmem:[%s5 + $0x78] sm:$0xf] %vm1045, %v1043
  %1077 = vst.msk [vmem:[%s5 + $0x7c] sm:$0xf] %vm1045, %v1044
  %1110 = vrot.lane.b32.xlu0 %v1013, 96
  %v1111 = vpop.permute.xlu0 %1110
  %1112 = vrot.lane.b32.xlu0 %v1014, 96
  %v1113 = vpop.permute.xlu0 %1112
  %1114 = vrot.lane.b32.xlu0 %v1015, 96
  %v1115 = vpop.permute.xlu0 %1114
  %1116 = vrot.lane.b32.xlu0 %v1016, 96
  %v1117 = vpop.permute.xlu0 %1116
  %1118 = vrot.lane.b32.xlu0 %v1017, 96
  %v1119 = vpop.permute.xlu0 %1118
  %1120 = vrot.lane.b32.xlu0 %v1018, 96
  %v1121 = vpop.permute.xlu0 %1120
  %1122 = vrot.lane.b32.xlu0 %v1019, 96
  %v1123 = vpop.permute.xlu0 %1122
  %1124 = vrot.lane.b32.xlu0 %v1020, 96
  %v1125 = vpop.permute.xlu0 %1124
  %1126 = vrot.lane.b32.xlu0 %v1021, 96
  %v1127 = vpop.permute.xlu0 %1126
  %1128 = vrot.lane.b32.xlu0 %v1022, 96
  %v1129 = vpop.permute.xlu0 %1128
  %1130 = vrot.lane.b32.xlu0 %v1023, 96
  %v1131 = vpop.permute.xlu0 %1130
  %1132 = vrot.lane.b32.xlu0 %v1024, 96
  %v1133 = vpop.permute.xlu0 %1132
  %1134 = vrot.lane.b32.xlu0 %v1025, 96
  %v1135 = vpop.permute.xlu0 %1134
  %1136 = vrot.lane.b32.xlu0 %v1026, 96
  %v1137 = vpop.permute.xlu0 %1136
  %1138 = vrot.lane.b32.xlu0 %v1027, 96
  %v1139 = vpop.permute.xlu0 %1138
  %1140 = vrot.lane.b32.xlu0 %v1028, 96
  %v1141 = vpop.permute.xlu0 %1140
  %1142 = vrot.lane.b32.xlu0 %v1029, 96
  %v1143 = vpop.permute.xlu0 %1142
  %1144 = vrot.lane.b32.xlu0 %v1030, 96
  %v1145 = vpop.permute.xlu0 %1144
  %1146 = vrot.lane.b32.xlu0 %v1031, 96
  %v1147 = vpop.permute.xlu0 %1146
  %1148 = vrot.lane.b32.xlu0 %v1032, 96
  %v1149 = vpop.permute.xlu0 %1148
  %1150 = vrot.lane.b32.xlu0 %v1033, 96
  %v1151 = vpop.permute.xlu0 %1150
  %1152 = vrot.lane.b32.xlu0 %v1034, 96
  %v1153 = vpop.permute.xlu0 %1152
  %1154 = vrot.lane.b32.xlu0 %v1035, 96
  %v1155 = vpop.permute.xlu0 %1154
  %1156 = vrot.lane.b32.xlu0 %v1036, 96
  %v1157 = vpop.permute.xlu0 %1156
  %1158 = vrot.lane.b32.xlu0 %v1037, 96
  %v1159 = vpop.permute.xlu0 %1158
  %1160 = vrot.lane.b32.xlu0 %v1038, 96
  %v1161 = vpop.permute.xlu0 %1160
  %1162 = vrot.lane.b32.xlu0 %v1039, 96
  %v1163 = vpop.permute.xlu0 %1162
  %1164 = vrot.lane.b32.xlu0 %v1040, 96
  %v1165 = vpop.permute.xlu0 %1164
  %1166 = vrot.lane.b32.xlu0 %v1041, 96
  %v1167 = vpop.permute.xlu0 %1166
  %1168 = vrot.lane.b32.xlu0 %v1042, 96
  %v1169 = vpop.permute.xlu0 %1168
  %1170 = vrot.lane.b32.xlu0 %v1043, 96
  %v1171 = vpop.permute.xlu0 %1170
  %1172 = vrot.lane.b32.xlu0 %v1044, 96
  %v1173 = vpop.permute.xlu0 %1172
  %1206 = vst.msk [vmem:[%s6] sm:$0xf] %vm1045, %v1111
  %1207 = vst.msk [vmem:[%s6 + $0x4] sm:$0xf] %vm1045, %v1113
  %1208 = vst.msk [vmem:[%s6 + $0x8] sm:$0xf] %vm1045, %v1115
  %1209 = vst.msk [vmem:[%s6 + $0xc] sm:$0xf] %vm1045, %v1117
  %1210 = vst.msk [vmem:[%s6 + $0x10] sm:$0xf] %vm1045, %v1119
  %1211 = vst.msk [vmem:[%s6 + $0x14] sm:$0xf] %vm1045, %v1121
  %1212 = vst.msk [vmem:[%s6 + $0x18] sm:$0xf] %vm1045, %v1123
  %1213 = vst.msk [vmem:[%s6 + $0x1c] sm:$0xf] %vm1045, %v1125
  %1214 = vst.msk [vmem:[%s6 + $0x20] sm:$0xf] %vm1045, %v1127
  %1215 = vst.msk [vmem:[%s6 + $0x24] sm:$0xf] %vm1045, %v1129
  %1216 = vst.msk [vmem:[%s6 + $0x28] sm:$0xf] %vm1045, %v1131
  %1217 = vst.msk [vmem:[%s6 + $0x2c] sm:$0xf] %vm1045, %v1133
  %1218 = vst.msk [vmem:[%s6 + $0x30] sm:$0xf] %vm1045, %v1135
  %1219 = vst.msk [vmem:[%s6 + $0x34] sm:$0xf] %vm1045, %v1137
  %1220 = vst.msk [vmem:[%s6 + $0x38] sm:$0xf] %vm1045, %v1139
  %1221 = vst.msk [vmem:[%s6 + $0x3c] sm:$0xf] %vm1045, %v1141
  %1222 = vst.msk [vmem:[%s6 + $0x40] sm:$0xf] %vm1045, %v1143
  %1223 = vst.msk [vmem:[%s6 + $0x44] sm:$0xf] %vm1045, %v1145
  %1224 = vst.msk [vmem:[%s6 + $0x48] sm:$0xf] %vm1045, %v1147
  %1225 = vst.msk [vmem:[%s6 + $0x4c] sm:$0xf] %vm1045, %v1149
  %1226 = vst.msk [vmem:[%s6 + $0x50] sm:$0xf] %vm1045, %v1151
  %1227 = vst.msk [vmem:[%s6 + $0x54] sm:$0xf] %vm1045, %v1153
  %1228 = vst.msk [vmem:[%s6 + $0x58] sm:$0xf] %vm1045, %v1155
  %1229 = vst.msk [vmem:[%s6 + $0x5c] sm:$0xf] %vm1045, %v1157
  %1230 = vst.msk [vmem:[%s6 + $0x60] sm:$0xf] %vm1045, %v1159
  %1231 = vst.msk [vmem:[%s6 + $0x64] sm:$0xf] %vm1045, %v1161
  %1232 = vst.msk [vmem:[%s6 + $0x68] sm:$0xf] %vm1045, %v1163
  %1233 = vst.msk [vmem:[%s6 + $0x6c] sm:$0xf] %vm1045, %v1165
  %1234 = vst.msk [vmem:[%s6 + $0x70] sm:$0xf] %vm1045, %v1167
  %1235 = vst.msk [vmem:[%s6 + $0x74] sm:$0xf] %vm1045, %v1169
  %1236 = vst.msk [vmem:[%s6 + $0x78] sm:$0xf] %vm1045, %v1171
  %1237 = vst.msk [vmem:[%s6 + $0x7c] sm:$0xf] %vm1045, %v1173
  %1238 = vrot.lane.b32.xlu0 %v1013, 64
  %v1239 = vpop.permute.xlu0 %1238
  %1240 = vrot.lane.b32.xlu0 %v1014, 64
  %v1241 = vpop.permute.xlu0 %1240
  %1242 = vrot.lane.b32.xlu0 %v1015, 64
  %v1243 = vpop.permute.xlu0 %1242
  %1244 = vrot.lane.b32.xlu0 %v1016, 64
  %v1245 = vpop.permute.xlu0 %1244
  %1246 = vrot.lane.b32.xlu0 %v1017, 64
  %v1247 = vpop.permute.xlu0 %1246
  %1248 = vrot.lane.b32.xlu0 %v1018, 64
  %v1249 = vpop.permute.xlu0 %1248
  %1250 = vrot.lane.b32.xlu0 %v1019, 64
  %v1251 = vpop.permute.xlu0 %1250
  %1252 = vrot.lane.b32.xlu0 %v1020, 64
  %v1253 = vpop.permute.xlu0 %1252
  %1254 = vrot.lane.b32.xlu0 %v1021, 64
  %v1255 = vpop.permute.xlu0 %1254
  %1256 = vrot.lane.b32.xlu0 %v1022, 64
  %v1257 = vpop.permute.xlu0 %1256
  %1258 = vrot.lane.b32.xlu0 %v1023, 64
  %v1259 = vpop.permute.xlu0 %1258
  %1260 = vrot.lane.b32.xlu0 %v1024, 64
  %v1261 = vpop.permute.xlu0 %1260
  %1262 = vrot.lane.b32.xlu0 %v1025, 64
  %v1263 = vpop.permute.xlu0 %1262
  %1264 = vrot.lane.b32.xlu0 %v1026, 64
  %v1265 = vpop.permute.xlu0 %1264
  %1266 = vrot.lane.b32.xlu0 %v1027, 64
  %v1267 = vpop.permute.xlu0 %1266
  %1268 = vrot.lane.b32.xlu0 %v1028, 64
  %v1269 = vpop.permute.xlu0 %1268
  %1270 = vrot.lane.b32.xlu0 %v1029, 64
  %v1271 = vpop.permute.xlu0 %1270
  %1272 = vrot.lane.b32.xlu0 %v1030, 64
  %v1273 = vpop.permute.xlu0 %1272
  %1274 = vrot.lane.b32.xlu0 %v1031, 64
  %v1275 = vpop.permute.xlu0 %1274
  %1276 = vrot.lane.b32.xlu0 %v1032, 64
  %v1277 = vpop.permute.xlu0 %1276
  %1278 = vrot.lane.b32.xlu0 %v1033, 64
  %v1279 = vpop.permute.xlu0 %1278
  %1280 = vrot.lane.b32.xlu0 %v1034, 64
  %v1281 = vpop.permute.xlu0 %1280
  %1282 = vrot.lane.b32.xlu0 %v1035, 64
  %v1283 = vpop.permute.xlu0 %1282
  %1284 = vrot.lane.b32.xlu0 %v1036, 64
  %v1285 = vpop.permute.xlu0 %1284
  %1286 = vrot.lane.b32.xlu0 %v1037, 64
  %v1287 = vpop.permute.xlu0 %1286
  %1288 = vrot.lane.b32.xlu0 %v1038, 64
  %v1289 = vpop.permute.xlu0 %1288
  %1290 = vrot.lane.b32.xlu0 %v1039, 64
  %v1291 = vpop.permute.xlu0 %1290
  %1292 = vrot.lane.b32.xlu0 %v1040, 64
  %v1293 = vpop.permute.xlu0 %1292
  %1294 = vrot.lane.b32.xlu0 %v1041, 64
  %v1295 = vpop.permute.xlu0 %1294
  %1296 = vrot.lane.b32.xlu0 %v1042, 64
  %v1297 = vpop.permute.xlu0 %1296
  %1298 = vrot.lane.b32.xlu0 %v1043, 64
  %v1299 = vpop.permute.xlu0 %1298
  %1300 = vrot.lane.b32.xlu0 %v1044, 64
  %v1301 = vpop.permute.xlu0 %1300
  %1334 = vst.msk [vmem:[%s7] sm:$0xf] %vm1045, %v1239
  %1335 = vst.msk [vmem:[%s7 + $0x4] sm:$0xf] %vm1045, %v1241
  %1336 = vst.msk [vmem:[%s7 + $0x8] sm:$0xf] %vm1045, %v1243
  %1337 = vst.msk [vmem:[%s7 + $0xc] sm:$0xf] %vm1045, %v1245
  %1338 = vst.msk [vmem:[%s7 + $0x10] sm:$0xf] %vm1045, %v1247
  %1339 = vst.msk [vmem:[%s7 + $0x14] sm:$0xf] %vm1045, %v1249
  %1340 = vst.msk [vmem:[%s7 + $0x18] sm:$0xf] %vm1045, %v1251
  %1341 = vst.msk [vmem:[%s7 + $0x1c] sm:$0xf] %vm1045, %v1253
  %1342 = vst.msk [vmem:[%s7 + $0x20] sm:$0xf] %vm1045, %v1255
  %1343 = vst.msk [vmem:[%s7 + $0x24] sm:$0xf] %vm1045, %v1257
  %1344 = vst.msk [vmem:[%s7 + $0x28] sm:$0xf] %vm1045, %v1259
  %1345 = vst.msk [vmem:[%s7 + $0x2c] sm:$0xf] %vm1045, %v1261
  %1346 = vst.msk [vmem:[%s7 + $0x30] sm:$0xf] %vm1045, %v1263
  %1347 = vst.msk [vmem:[%s7 + $0x34] sm:$0xf] %vm1045, %v1265
  %1348 = vst.msk [vmem:[%s7 + $0x38] sm:$0xf] %vm1045, %v1267
  %1349 = vst.msk [vmem:[%s7 + $0x3c] sm:$0xf] %vm1045, %v1269
  %1350 = vst.msk [vmem:[%s7 + $0x40] sm:$0xf] %vm1045, %v1271
  %1351 = vst.msk [vmem:[%s7 + $0x44] sm:$0xf] %vm1045, %v1273
  %1352 = vst.msk [vmem:[%s7 + $0x48] sm:$0xf] %vm1045, %v1275
  %1353 = vst.msk [vmem:[%s7 + $0x4c] sm:$0xf] %vm1045, %v1277
  %1354 = vst.msk [vmem:[%s7 + $0x50] sm:$0xf] %vm1045, %v1279
  %1355 = vst.msk [vmem:[%s7 + $0x54] sm:$0xf] %vm1045, %v1281
  %1356 = vst.msk [vmem:[%s7 + $0x58] sm:$0xf] %vm1045, %v1283
  %1357 = vst.msk [vmem:[%s7 + $0x5c] sm:$0xf] %vm1045, %v1285
  %1358 = vst.msk [vmem:[%s7 + $0x60] sm:$0xf] %vm1045, %v1287
  %1359 = vst.msk [vmem:[%s7 + $0x64] sm:$0xf] %vm1045, %v1289
  %1360 = vst.msk [vmem:[%s7 + $0x68] sm:$0xf] %vm1045, %v1291
  %1361 = vst.msk [vmem:[%s7 + $0x6c] sm:$0xf] %vm1045, %v1293
  %1362 = vst.msk [vmem:[%s7 + $0x70] sm:$0xf] %vm1045, %v1295
  %1363 = vst.msk [vmem:[%s7 + $0x74] sm:$0xf] %vm1045, %v1297
  %1364 = vst.msk [vmem:[%s7 + $0x78] sm:$0xf] %vm1045, %v1299
  %1365 = vst.msk [vmem:[%s7 + $0x7c] sm:$0xf] %vm1045, %v1301
  // Predicated region
  $region22: #{tpu_custom_call.1} parent=0 // pred_check
    _
  $region23: #{tpu_custom_call.1} parent=0 // pred_check_branch
    %1367 = sbr.rel (0) target = $region25
  $region24: #{tpu_custom_call.1} parent=0 // pred_region
    _
  $region25: #{tpu_custom_call.1} parent=0 // pred_fallthru
    _
  // Predicated region
  $region26: #{tpu_custom_call.1} parent=0 // pred_check
    _
  $region27: #{tpu_custom_call.1} parent=0 // pred_check_branch
    %1369 = sbr.rel (0) target = $region29
  $region28: #{tpu_custom_call.1} parent=0 // pred_region
    _
  $region29: #{tpu_custom_call.1} parent=0 // pred_fallthru
    _
  // Predicated region
  $region30: #{tpu_custom_call.1} parent=0 // pred_check
    _
  $region31: #{tpu_custom_call.1} parent=0 // pred_check_branch
    %1371 = sbr.rel (0) target = $region33
  $region32: #{tpu_custom_call.1} parent=0 // pred_region
    _
  $region33: #{tpu_custom_call.1} parent=0 // pred_fallthru
    _
  // Predicated region
  $region34: #{tpu_custom_call.1} parent=0 // pred_check
    _
  $region35: #{tpu_custom_call.1} parent=0 // pred_check_branch
    %1373 = sbr.rel (0) target = $region37
  $region36: #{tpu_custom_call.1} parent=0 // pred_region
    _
  $region37: #{tpu_custom_call.1} parent=0 // pred_fallthru
    _
  // Predicated region
  $region38: #{tpu_custom_call.1} parent=0 // pred_check
    _
  $region39: #{tpu_custom_call.1} parent=0 // pred_check_branch
    %1375 = sbr.rel (0) target = $region41
  $region40: #{tpu_custom_call.1} parent=0 // pred_region
    _
  $region41: #{tpu_custom_call.1} parent=0 // pred_fallthru
    _
  // Predicated region
  $region42: #{tpu_custom_call.1} parent=0 // pred_check
    _
  $region43: #{tpu_custom_call.1} parent=0 // pred_check_branch
    %1377 = sbr.rel (0) target = $region45
  $region44: #{tpu_custom_call.1} parent=0 // pred_region
    _
  $region45: #{tpu_custom_call.1} parent=0 // pred_fallthru
    _

</llo_original>
